<compile_context>
chip_gen: v7x
topology: tpu7x:2x2x1
jax: 0.10.0
libtpu: 0.0.40
codegen_flags: <defaults>
</compile_context>

<pallas_src>
import functools

import numpy as np
import jax
import jax.numpy as jnp
from jax import lax
from jax.experimental import pallas as pl
from jax.experimental.pallas import tpu as pltpu

EPS = 1e-5
NEG_SLOPE = 0.2
INTERMEDIATE_DTYPE = jnp.bfloat16   # HBM storage of `up` / `c1`


# ------------------------------ kernel helpers ------------------------------

def _leaky(v):
    return jnp.where(v > 0, v, NEG_SLOPE * v)


def _lane_shift(a, q0, roll_sign):
    """result[:, p] = a[:, (p + q0) mod N].  Uses the XLU rotate; roll_sign
    encodes pltpu.roll's direction convention (0 = slice+concat fallback)."""
    n = a.shape[-1]
    if roll_sign == 0:                       # safe fallback (slower)
        q = q0 % n
        if q == 0:
            return a
        return jnp.concatenate([a[:, q:], a[:, :q]], axis=1)
    shift = (roll_sign * (-q0)) % n
    if shift == 0:
        return a
    return pltpu.roll(a, shift=shift, axis=1)


def _im2col(a, m9, W, roll_sign):
    """a: (Cp, N) f32, spatial (and batch) flattened on the lane axis.
    m9: (9, N) combined per-tap border masks (zero where the tap would read
    outside the image / across an image boundary).
    Returns (9*Cp, N): row block t = ky*3+kx is the input shifted so output
    pixel (h, w) reads input (h+ky-1, w+kx-1), zero-padded at the border."""
    taps = []
    for ky in range(3):
        for kx in range(3):
            q0 = (ky - 1) * W + (kx - 1)
            if q0 == 0:                       # centre tap: no shift, no mask
                taps.append(a)
                continue
            t = ky * 3 + kx
            s = _lane_shift(a, q0, roll_sign)
            taps.append(s * m9[t:t + 1, :])   # one mask multiply per tap
    return jnp.concatenate(taps, axis=0)


@functools.lru_cache(maxsize=None)
def _tap_masks(H, W, B):
    """Constant (9, B*H*W) f32 combined validity mask per 3x3 tap (built at
    trace time with numpy, tiled per image along the lane axis)."""
    idx = np.arange(H * W)
    r, c = idx // W, idx % W
    rows = []
    for ky in range(3):
        for kx in range(3):
            dy, dx = ky - 1, kx - 1
            m = np.ones(H * W, np.float32)
            if dy == -1:
                m = m * (r >= 1)
            if dy == 1:
                m = m * (r <= H - 2)
            if dx == -1:
                m = m * (c >= 1)
            if dx == 1:
                m = m * (c <= W - 2)
            rows.append(m.astype(np.float32))
    return jnp.asarray(np.tile(np.stack(rows), (1, B)))


@functools.lru_cache(maxsize=None)
def _roll_sign():
    """Probe pltpu.roll's direction convention once (outside the main jit)."""
    def probe(x_ref, o_ref):
        o_ref[...] = pltpu.roll(x_ref[...], shift=1, axis=1)
    try:
        x = jnp.tile(jnp.arange(128, dtype=jnp.float32)[None, :], (8, 1))
        y = np.asarray(pl.pallas_call(
            probe, out_shape=jax.ShapeDtypeStruct((8, 128), jnp.float32))(x))
        if np.array_equal(y, np.asarray(jnp.roll(x, 1, axis=1))):
            return 1
        if np.array_equal(y, np.asarray(jnp.roll(x, -1, axis=1))):
            return -1
        return 0
    except Exception:
        return 0


# ------------------------------ Pallas kernels ------------------------------

def upsample_stats_kernel(x_ref, old_ref, m9_ref, wu_ref, bu_ref,
                          up_ref, st_ref, *, W, roll_sign):
    """up = conv3x3(x) as one im2col matmul (K = 9*Cin_p); also emit the BN1
    per-channel sum / sum^2 of z = [up, old] (stats taken on the values the
    later passes will actually read, i.e. after the bf16 round-trip of up)."""
    x = x_ref[...].astype(jnp.float32)                      # (Cin_p, N)
    patches = _im2col(x, m9_ref[...], W, roll_sign)         # (9*Cin_p, N)
    up = jnp.dot(wu_ref[...], patches,
                 preferred_element_type=jnp.float32) + bu_ref[...]
    up_q = up.astype(up_ref.dtype)
    up_ref[...] = up_q

    upf = up_q.astype(jnp.float32)
    old = old_ref[...].astype(jnp.float32)                  # (Cout, N)
    s = jnp.concatenate([jnp.sum(upf, axis=1, keepdims=True),
                         jnp.sum(old, axis=1, keepdims=True)], axis=0)
    sq = jnp.concatenate([jnp.sum(upf * upf, axis=1, keepdims=True),
                          jnp.sum(old * old, axis=1, keepdims=True)], axis=0)
    st_ref[...] = jnp.concatenate([s, sq], axis=1)          # (C, 2)


def conv1_stats_kernel(up_ref, old_ref, m9_ref, s1_ref, t1_ref, w1_ref, b1_ref,
                       c1_ref, st_ref, *, W, roll_sign):
    """c1 = conv3x3(LeakyReLU(BN1(z))) with z = [up, old] concatenated in
    VMEM; also emit BN2 per-channel sum / sum^2 of (bf16-rounded) c1."""
    z = jnp.concatenate([up_ref[...].astype(jnp.float32),
                         old_ref[...].astype(jnp.float32)], axis=0)  # (C, N)
    a0 = _leaky(z * s1_ref[...] + t1_ref[...])              # BN1 + LeakyReLU
    patches = _im2col(a0, m9_ref[...], W, roll_sign)        # (9*C, N)
    c1 = jnp.dot(w1_ref[...], patches,
                 preferred_element_type=jnp.float32) + b1_ref[...]
    c1_q = c1.astype(c1_ref.dtype)
    c1_ref[...] = c1_q

    c1f = c1_q.astype(jnp.float32)
    st_ref[...] = jnp.concatenate([jnp.sum(c1f, axis=1, keepdims=True),
                                   jnp.sum(c1f * c1f, axis=1, keepdims=True)],
                                  axis=1)                   # (C, 2)


def conv2_residual_kernel(c1_ref, up_ref, old_ref, m9_ref, s1_ref, t1_ref,
                          s2_ref, t2_ref, w2_ref, b2_ref, w11_ref, b11_ref,
                          o_ref, *, W, roll_sign):
    """out = conv3x3(LeakyReLU(BN2(c1))) + conv1x1(BN1(z))."""
    c1 = c1_ref[...].astype(jnp.float32)
    a1 = _leaky(c1 * s2_ref[...] + t2_ref[...])             # BN2 + LeakyReLU
    patches = _im2col(a1, m9_ref[...], W, roll_sign)
    c2 = jnp.dot(w2_ref[...], patches,
                 preferred_element_type=jnp.float32) + b2_ref[...]

    z = jnp.concatenate([up_ref[...].astype(jnp.float32),
                         old_ref[...].astype(jnp.float32)], axis=0)
    n = z * s1_ref[...] + t1_ref[...]                       # BN1 output
    branch = jnp.dot(w11_ref[...], n,
                     preferred_element_type=jnp.float32) + b11_ref[...]
    o_ref[...] = (c2 + branch).astype(o_ref.dtype)


# ------------------------------ host-side glue ------------------------------

def _scale_shift(stats, gamma, beta, n):
    mean = stats[:, 0] / n
    var = jnp.maximum(stats[:, 1] / n - mean * mean, 0.0)   # biased, clamped
    scale = gamma * lax.rsqrt(var + EPS)
    shift = beta - mean * scale
    return scale.reshape(-1, 1), shift.reshape(-1, 1)


def prepare_kernel_params(params):
    """One-time weight re-layout (hoisted out of the per-call forward):
    im2col layout w_mat[co, (ky*3+kx)*Cin_p + ci] = w_hwio[ky, kx, ci, co];
    pass-A input channels zero-padded to a full 8-sublane tile."""
    cin = params["w_up"].shape[2]
    cout = params["w_up"].shape[3]
    C = 2 * cout
    cin_p = max(8, ((cin + 7) // 8) * 8)

    w_up = jnp.pad(params["w_up"], ((0, 0), (0, 0), (0, cin_p - cin), (0, 0)))
    w_up = jnp.transpose(w_up, (3, 0, 1, 2)).reshape(cout, 9 * cin_p)
    w_l1 = jnp.transpose(params["w_l1"], (3, 0, 1, 2)).reshape(C, 9 * C)
    w_l2 = jnp.transpose(params["w_l2"], (3, 0, 1, 2)).reshape(C, 9 * C)
    return dict(
        w_up=w_up, b_up=params["b_up"].reshape(cout, 1),
        w_l1=w_l1, b_l1=params["b_l1"].reshape(C, 1),
        w_l2=w_l2, b_l2=params["b_l2"].reshape(C, 1),
        w_11=params["w_11"].T, b_11=params["b_11"].reshape(C, 1),
        gamma1=params["gamma1"], beta1=params["beta1"],
        gamma2=params["gamma2"], beta2=params["beta2"],
    )


@functools.partial(jax.jit, static_argnames=("roll_sign",))
def _forward_impl(kp, x_nchw, old_nchw, roll_sign):
    B, Cin, H, W = x_nchw.shape
    Cout = kp["b_up"].shape[0]
    C = 2 * Cout
    cin_p = kp["w_up"].shape[1] // 9
    N = B * H * W

    # NCHW -> lane-dense (channels, batch*H*W): batch folded into lanes so one
    # matmul per conv sees the whole N extent; no transposes inside kernels.
    x = jnp.transpose(x_nchw, (1, 0, 2, 3)).reshape(Cin, N)
    x = jnp.pad(x, ((0, cin_p - Cin), (0, 0)))              # 8-sublane taps
    old = jnp.transpose(old_nchw, (1, 0, 2, 3)).reshape(Cout, N)
    m9 = _tap_masks(H, W, B)                                # (9, N) constant

    cp = pltpu.CompilerParams(dimension_semantics=("parallel",),
                              vmem_limit_bytes=32 * 1024 * 1024)
    full = lambda i: (0, 0)                                 # grid=(1,) blocks

    # ---- pass A: upsample conv + BN1 statistics ---------------------------
    up, st1 = pl.pallas_call(
        functools.partial(upsample_stats_kernel, W=W, roll_sign=roll_sign),
        out_shape=(jax.ShapeDtypeStruct((Cout, N), INTERMEDIATE_DTYPE),
                   jax.ShapeDtypeStruct((C, 2), jnp.float32)),
        grid=(1,),
        in_specs=[
            pl.BlockSpec((cin_p, N), full),
            pl.BlockSpec((Cout, N), full),
            pl.BlockSpec((9, N), full),
            pl.BlockSpec((Cout, 9 * cin_p), full),
            pl.BlockSpec((Cout, 1), full),
        ],
        out_specs=(pl.BlockSpec((Cout, N), full),
                   pl.BlockSpec((C, 2), full)),
        compiler_params=cp,
    )(x, old, m9, kp["w_up"], kp["b_up"])

    s1, t1 = _scale_shift(st1, kp["gamma1"], kp["beta1"], N)

    # ---- pass B: BN1-apply + LeakyReLU + conv1 + BN2 statistics -----------
    c1, st2 = pl.pallas_call(
        functools.partial(conv1_stats_kernel, W=W, roll_sign=roll_sign),
        out_shape=(jax.ShapeDtypeStruct((C, N), INTERMEDIATE_DTYPE),
                   jax.ShapeDtypeStruct((C, 2), jnp.float32)),
        grid=(1,),
        in_specs=[
            pl.BlockSpec((Cout, N), full),
            pl.BlockSpec((Cout, N), full),
            pl.BlockSpec((9, N), full),
            pl.BlockSpec((C, 1), full),
            pl.BlockSpec((C, 1), full),
            pl.BlockSpec((C, 9 * C), full),
            pl.BlockSpec((C, 1), full),
        ],
        out_specs=(pl.BlockSpec((C, N), full),
                   pl.BlockSpec((C, 2), full)),
        compiler_params=cp,
    )(up, old, m9, s1, t1, kp["w_l1"], kp["b_l1"])

    s2, t2 = _scale_shift(st2, kp["gamma2"], kp["beta2"], N)

    # ---- pass C: BN2-apply + LeakyReLU + conv2 + 1x1 residual + add -------
    out = pl.pallas_call(
        functools.partial(conv2_residual_kernel, W=W, roll_sign=roll_sign),
        out_shape=jax.ShapeDtypeStruct((C, N), jnp.float32),
        grid=(1,),
        in_specs=[
            pl.BlockSpec((C, N), full),
            pl.BlockSpec((Cout, N), full),
            pl.BlockSpec((Cout, N), full),
            pl.BlockSpec((9, N), full),
            pl.BlockSpec((C, 1), full),
            pl.BlockSpec((C, 1), full),
            pl.BlockSpec((C, 1), full),
            pl.BlockSpec((C, 1), full),
            pl.BlockSpec((C, 9 * C), full),
            pl.BlockSpec((C, 1), full),
            pl.BlockSpec((C, C), full),
            pl.BlockSpec((C, 1), full),
        ],
        out_specs=pl.BlockSpec((C, N), full),
        compiler_params=cp,
    )(c1, up, old, m9, s1, t1, s2, t2, kp["w_l2"], kp["b_l2"],
      kp["w_11"], kp["b_11"])

    return jnp.transpose(out.reshape(C, B, H, W), (1, 0, 2, 3))   # NCHW


def full_up_block_forward(kparams, x_nchw, old_nchw):
    return _forward_impl(kparams, x_nchw, old_nchw, roll_sign=_roll_sign())


# ------------------------------ parameters ----------------------------------

def init_params(key, in_chans, out_chans):
    """Deterministic init; shapes mirror the PyTorch module.  Conv weights are
    HWIO; w_11 is (Cin, Cout); BN affine params are PyTorch defaults."""
    C = 2 * out_chans
    ks = jax.random.split(key, 8)

    def u(k, shape, fan_in):
        bound = 1.0 / np.sqrt(fan_in)
        return jax.random.uniform(k, shape, jnp.float32, -bound, bound)

    return dict(
        w_up=u(ks[0], (3, 3, in_chans, out_chans), 9 * in_chans),
        b_up=u(ks[1], (out_chans,), 9 * in_chans),
        gamma1=jnp.ones((C,), jnp.float32),
        beta1=jnp.zeros((C,), jnp.float32),
        w_11=u(ks[2], (C, C), C),
        b_11=u(ks[3], (C,), C),
        w_l1=u(ks[4], (3, 3, C, C), 9 * C),
        b_l1=u(ks[5], (C,), 9 * C),
        gamma2=jnp.ones((C,), jnp.float32),
        beta2=jnp.zeros((C,), jnp.float32),
        w_l2=u(ks[6], (3, 3, C, C), 9 * C),
        b_l2=u(ks[7], (C,), 9 * C),
    )


# ------------------------------ pure-JAX reference --------------------------

def ref_forward(params, x_nchw, old_nchw, quantize_intermediates=False):
    """f32 reference of the PyTorch forward.  quantize_intermediates=True
    additionally rounds `up` and `c1` through bf16 exactly where the Pallas
    implementation stores them, to isolate quantization from kernel math."""
    x = jnp.transpose(x_nchw, (0, 2, 3, 1)).astype(jnp.float32)
    old = jnp.transpose(old_nchw, (0, 2, 3, 1)).astype(jnp.float32)

    def conv(v, w, b):
        y = lax.conv_general_dilated(
            v, w, (1, 1), "SAME",
            dimension_numbers=("NHWC", "HWIO", "NHWC"),
            precision=lax.Precision.HIGHEST)
        return y + b[None, None, None, :]

    def bn(v, g, b):
        mean = jnp.mean(v, axis=(0, 1, 2))
        var = jnp.mean(jnp.square(v - mean), axis=(0, 1, 2))
        return (v - mean) / jnp.sqrt(var + EPS) * g + b

    def lrelu(v):
        return jnp.where(v > 0, v, NEG_SLOPE * v)

    def q(v):
        if quantize_intermediates:
            return v.astype(INTERMEDIATE_DTYPE).astype(jnp.float32)
        return v

    up = q(conv(x, params["w_up"], params["b_up"]))
    z = jnp.concatenate([up, old], axis=-1)
    n = bn(z, params["gamma1"], params["beta1"])
    c1 = q(conv(lrelu(n), params["w_l1"], params["b_l1"]))
    a1 = lrelu(bn(c1, params["gamma2"], params["beta2"]))
    c2 = conv(a1, params["w_l2"], params["b_l2"])
    branch11 = jnp.einsum("bhwc,cd->bhwd", n, params["w_11"],
                          precision=lax.Precision.HIGHEST) + params["b_11"]
    return jnp.transpose(c2 + branch11, (0, 3, 1, 2))


# ---------------------------------- main ------------------------------------

if __name__ == "__main__":
    key = jax.random.PRNGKey(0)
    kparam, kx, ko = jax.random.split(key, 3)

    B, in_chans, out_chans, H, W = 2, 4, 4, 16, 16
    params = init_params(kparam, in_chans, out_chans)
    kernel_params = prepare_kernel_params(params)
    x = jax.random.normal(kx, (B, in_chans, H, W), jnp.float32)
    old = jax.random.normal(ko, (B, out_chans, H, W), jnp.float32)

    out = jax.block_until_ready(full_up_block_forward(kernel_params, x, old))
    assert out.shape == (B, 2 * out_chans, H, W), out.shape

    # Strict check vs. a reference that applies the same bf16 rounding of the
    # HBM intermediates -> validates the kernel math itself.
    ref_q = jax.block_until_ready(
        ref_forward(params, x, old, quantize_intermediates=True))
    np.testing.assert_allclose(np.asarray(out), np.asarray(ref_q),
                               rtol=1e-2, atol=1e-2)

    # Looser check vs. the pure-f32 reference (tolerance loosened only because
    # `up`/`c1` are stored in bf16 for HBM-bandwidth reasons).
    ref = jax.block_until_ready(ref_forward(params, x, old))
    np.testing.assert_allclose(np.asarray(out), np.asarray(ref),
                               rtol=5e-2, atol=5e-2)
    print("KERNEL_OK")
</pallas_src>

<mosaic_0001>
module attributes {stable_mosaic.version = 11 : i64} {
  func.func @probe(%arg0: memref<8x128xf32, #tpu.memory_space<vmem>>, %arg1: memref<8x128xf32, #tpu.memory_space<vmem>>) attributes {dimension_semantics = [], scalar_prefetch = 0 : i64, scratch_operands = 0 : i64, tpu.core_type = #tpu.core_type<tc>} {
    %c0 = arith.constant 0 : index
    %c0_0 = arith.constant 0 : index
    %0 = vector.load %arg0[%c0, %c0_0] : memref<8x128xf32, #tpu.memory_space<vmem>>, vector<8x128xf32>
    %c1_i32 = arith.constant 1 : i32
    %1 = tpu.dynamic_rotate %0 by %c1_i32 dim 1 : vector<8x128xf32>, i32 -> vector<8x128xf32>
    %c0_1 = arith.constant 0 : index
    %c0_2 = arith.constant 0 : index
    %2 = vector.load %arg1[%c0_1, %c0_2] : memref<8x128xf32, #tpu.memory_space<vmem>>, vector<8x128xf32>
    tpu.vector_store %arg1[%c0_1, %c0_2], %1 {strides = array<i32>} : memref<8x128xf32, #tpu.memory_space<vmem>>, vector<8x128xf32>,
    return
  }
}

module attributes {stable_mosaic.version = 11 : i64} {
  func.func @conv1_stats_kernel(%arg0: i32, %arg1: memref<4x512xbf16, #tpu.memory_space<vmem>>, %arg2: memref<4x512xf32, #tpu.memory_space<vmem>>, %arg3: memref<9x512xf32, #tpu.memory_space<vmem>>, %arg4: memref<8x1xf32, #tpu.memory_space<vmem>>, %arg5: memref<8x1xf32, #tpu.memory_space<vmem>>, %arg6: memref<8x72xf32, #tpu.memory_space<vmem>>, %arg7: memref<8x1xf32, #tpu.memory_space<vmem>>, %arg8: memref<8x512xbf16, #tpu.memory_space<vmem>>, %arg9: memref<8x2xf32, #tpu.memory_space<vmem>>) attributes {dimension_semantics = [#tpu.dimension_semantics<parallel>], iteration_bounds = array<i64: 1>, scalar_prefetch = 0 : i64, scratch_operands = 0 : i64, tpu.core_type = #tpu.core_type<tc>, window_params = [{pipeline_mode = #tpu.pipeline_mode<synchronous>, transform_indices = @transform_0, window_bounds = array<i64: 4, 512>}, {pipeline_mode = #tpu.pipeline_mode<synchronous>, transform_indices = @transform_1, window_bounds = array<i64: 4, 512>}, {pipeline_mode = #tpu.pipeline_mode<synchronous>, transform_indices = @transform_2, window_bounds = array<i64: 9, 512>}, {pipeline_mode = #tpu.pipeline_mode<synchronous>, transform_indices = @transform_3, window_bounds = array<i64: 8, 1>}, {pipeline_mode = #tpu.pipeline_mode<synchronous>, transform_indices = @transform_4, window_bounds = array<i64: 8, 1>}, {pipeline_mode = #tpu.pipeline_mode<synchronous>, transform_indices = @transform_5, window_bounds = array<i64: 8, 72>}, {pipeline_mode = #tpu.pipeline_mode<synchronous>, transform_indices = @transform_6, window_bounds = array<i64: 8, 1>}, {pipeline_mode = #tpu.pipeline_mode<synchronous>, transform_indices = @transform_7, window_bounds = array<i64: 8, 512>}, {pipeline_mode = #tpu.pipeline_mode<synchronous>, transform_indices = @transform_8, window_bounds = array<i64: 8, 2>}]} {
    %c0 = arith.constant 0 : index
    %c0_0 = arith.constant 0 : index
    %0 = vector.load %arg1[%c0, %c0_0] : memref<4x512xbf16, #tpu.memory_space<vmem>>, vector<4x512xbf16>
    %1 = arith.extf %0 : vector<4x512xbf16> to vector<4x512xf32>
    %c0_1 = arith.constant 0 : index
    %c0_2 = arith.constant 0 : index
    %2 = vector.load %arg2[%c0_1, %c0_2] : memref<4x512xf32, #tpu.memory_space<vmem>>, vector<4x512xf32>
    %3 = tpu.concatenate %1, %2 in 0 : vector<4x512xf32>, vector<4x512xf32> -> vector<8x512xf32>
    %c0_3 = arith.constant 0 : index
    %c0_4 = arith.constant 0 : index
    %4 = vector.load %arg4[%c0_3, %c0_4] : memref<8x1xf32, #tpu.memory_space<vmem>>, vector<8x1xf32>
    %5 = vector.broadcast %4 : vector<8x1xf32> to vector<8x512xf32>
    %6 = arith.mulf %3, %5 : vector<8x512xf32>
    %c0_5 = arith.constant 0 : index
    %c0_6 = arith.constant 0 : index
    %7 = vector.load %arg5[%c0_5, %c0_6] : memref<8x1xf32, #tpu.memory_space<vmem>>, vector<8x1xf32>
    %8 = vector.broadcast %7 : vector<8x1xf32> to vector<8x512xf32>
    %9 = arith.addf %6, %8 : vector<8x512xf32>
    %cst = arith.constant 0.000000e+00 : f32
    %10 = vector.broadcast %cst : f32 to vector<8x512xf32>
    %11 = arith.cmpf ogt, %9, %10 : vector<8x512xf32>
    %cst_7 = arith.constant 2.000000e-01 : f32
    %12 = vector.broadcast %cst_7 : f32 to vector<8x512xf32>
    %13 = arith.mulf %12, %9 : vector<8x512xf32>
    %14 = arith.select %11, %9, %13 : vector<8x512xi1>, vector<8x512xf32>
    %c0_8 = arith.constant 0 : index
    %c0_9 = arith.constant 0 : index
    %15 = vector.load %arg3[%c0_8, %c0_9] : memref<9x512xf32, #tpu.memory_space<vmem>>, vector<9x512xf32>
    %16 = vector.extract_strided_slice %14 {offsets = [0, 495], sizes = [8, 17], strides = [1, 1]} : vector<8x512xf32> to vector<8x17xf32>
    %17 = vector.extract_strided_slice %14 {offsets = [0, 0], sizes = [8, 495], strides = [1, 1]} : vector<8x512xf32> to vector<8x495xf32>
    %18 = tpu.concatenate %16, %17 in 1 : vector<8x17xf32>, vector<8x495xf32> -> vector<8x512xf32>
    %19 = vector.extract_strided_slice %15 {offsets = [0, 0], sizes = [1, 512], strides = [1, 1]} : vector<9x512xf32> to vector<1x512xf32>
    %20 = vector.broadcast %19 : vector<1x512xf32> to vector<8x512xf32>
    %21 = arith.mulf %18, %20 : vector<8x512xf32>
    %22 = vector.extract_strided_slice %14 {offsets = [0, 496], sizes = [8, 16], strides = [1, 1]} : vector<8x512xf32> to vector<8x16xf32>
    %23 = vector.extract_strided_slice %14 {offsets = [0, 0], sizes = [8, 496], strides = [1, 1]} : vector<8x512xf32> to vector<8x496xf32>
    %24 = tpu.concatenate %22, %23 in 1 : vector<8x16xf32>, vector<8x496xf32> -> vector<8x512xf32>
    %25 = vector.extract_strided_slice %15 {offsets = [1, 0], sizes = [1, 512], strides = [1, 1]} : vector<9x512xf32> to vector<1x512xf32>
    %26 = vector.broadcast %25 : vector<1x512xf32> to vector<8x512xf32>
    %27 = arith.mulf %24, %26 : vector<8x512xf32>
    %28 = vector.extract_strided_slice %14 {offsets = [0, 497], sizes = [8, 15], strides = [1, 1]} : vector<8x512xf32> to vector<8x15xf32>
    %29 = vector.extract_strided_slice %14 {offsets = [0, 0], sizes = [8, 497], strides = [1, 1]} : vector<8x512xf32> to vector<8x497xf32>
    %30 = tpu.concatenate %28, %29 in 1 : vector<8x15xf32>, vector<8x497xf32> -> vector<8x512xf32>
    %31 = vector.extract_strided_slice %15 {offsets = [2, 0], sizes = [1, 512], strides = [1, 1]} : vector<9x512xf32> to vector<1x512xf32>
    %32 = vector.broadcast %31 : vector<1x512xf32> to vector<8x512xf32>
    %33 = arith.mulf %30, %32 : vector<8x512xf32>
    %34 = vector.extract_strided_slice %14 {offsets = [0, 511], sizes = [8, 1], strides = [1, 1]} : vector<8x512xf32> to vector<8x1xf32>
    %35 = vector.extract_strided_slice %14 {offsets = [0, 0], sizes = [8, 511], strides = [1, 1]} : vector<8x512xf32> to vector<8x511xf32>
    %36 = tpu.concatenate %34, %35 in 1 : vector<8x1xf32>, vector<8x511xf32> -> vector<8x512xf32>
    %37 = vector.extract_strided_slice %15 {offsets = [3, 0], sizes = [1, 512], strides = [1, 1]} : vector<9x512xf32> to vector<1x512xf32>
    %38 = vector.broadcast %37 : vector<1x512xf32> to vector<8x512xf32>
    %39 = arith.mulf %36, %38 : vector<8x512xf32>
    %40 = vector.extract_strided_slice %14 {offsets = [0, 1], sizes = [8, 511], strides = [1, 1]} : vector<8x512xf32> to vector<8x511xf32>
    %41 = vector.extract_strided_slice %14 {offsets = [0, 0], sizes = [8, 1], strides = [1, 1]} : vector<8x512xf32> to vector<8x1xf32>
    %42 = tpu.concatenate %40, %41 in 1 : vector<8x511xf32>, vector<8x1xf32> -> vector<8x512xf32>
    %43 = vector.extract_strided_slice %15 {offsets = [5, 0], sizes = [1, 512], strides = [1, 1]} : vector<9x512xf32> to vector<1x512xf32>
    %44 = vector.broadcast %43 : vector<1x512xf32> to vector<8x512xf32>
    %45 = arith.mulf %42, %44 : vector<8x512xf32>
    %46 = vector.extract_strided_slice %14 {offsets = [0, 15], sizes = [8, 497], strides = [1, 1]} : vector<8x512xf32> to vector<8x497xf32>
    %47 = vector.extract_strided_slice %14 {offsets = [0, 0], sizes = [8, 15], strides = [1, 1]} : vector<8x512xf32> to vector<8x15xf32>
    %48 = tpu.concatenate %46, %47 in 1 : vector<8x497xf32>, vector<8x15xf32> -> vector<8x512xf32>
    %49 = vector.extract_strided_slice %15 {offsets = [6, 0], sizes = [1, 512], strides = [1, 1]} : vector<9x512xf32> to vector<1x512xf32>
    %50 = vector.broadcast %49 : vector<1x512xf32> to vector<8x512xf32>
    %51 = arith.mulf %48, %50 : vector<8x512xf32>
    %52 = vector.extract_strided_slice %14 {offsets = [0, 16], sizes = [8, 496], strides = [1, 1]} : vector<8x512xf32> to vector<8x496xf32>
    %53 = vector.extract_strided_slice %14 {offsets = [0, 0], sizes = [8, 16], strides = [1, 1]} : vector<8x512xf32> to vector<8x16xf32>
    %54 = tpu.concatenate %52, %53 in 1 : vector<8x496xf32>, vector<8x16xf32> -> vector<8x512xf32>
    %55 = vector.extract_strided_slice %15 {offsets = [7, 0], sizes = [1, 512], strides = [1, 1]} : vector<9x512xf32> to vector<1x512xf32>
    %56 = vector.broadcast %55 : vector<1x512xf32> to vector<8x512xf32>
    %57 = arith.mulf %54, %56 : vector<8x512xf32>
    %58 = vector.extract_strided_slice %14 {offsets = [0, 17], sizes = [8, 495], strides = [1, 1]} : vector<8x512xf32> to vector<8x495xf32>
    %59 = vector.extract_strided_slice %14 {offsets = [0, 0], sizes = [8, 17], strides = [1, 1]} : vector<8x512xf32> to vector<8x17xf32>
    %60 = tpu.concatenate %58, %59 in 1 : vector<8x495xf32>, vector<8x17xf32> -> vector<8x512xf32>
    %61 = vector.extract_strided_slice %15 {offsets = [8, 0], sizes = [1, 512], strides = [1, 1]} : vector<9x512xf32> to vector<1x512xf32>
    %62 = vector.broadcast %61 : vector<1x512xf32> to vector<8x512xf32>
    %63 = arith.mulf %60, %62 : vector<8x512xf32>
    %64 = tpu.concatenate %21, %27, %33, %39, %14, %45, %51, %57, %63 in 0 : vector<8x512xf32>, vector<8x512xf32>, vector<8x512xf32>, vector<8x512xf32>, vector<8x512xf32>, vector<8x512xf32>, vector<8x512xf32>, vector<8x512xf32>, vector<8x512xf32> -> vector<72x512xf32>
    %c0_10 = arith.constant 0 : index
    %c0_11 = arith.constant 0 : index
    %65 = vector.load %arg6[%c0_10, %c0_11] : memref<8x72xf32, #tpu.memory_space<vmem>>, vector<8x72xf32>
    %cst_12 = arith.constant dense<0.000000e+00> : vector<8x512xf32>
    %66 = tpu.matmul %65, %64, %cst_12 {dimension_numbers = #tpu.dot_dimension_numbers<[1], [0], [0], [1], [0, 0, 1, 1], [], []>} : vector<8x72xf32>, vector<72x512xf32>, vector<8x512xf32> -> vector<8x512xf32>
    %c0_13 = arith.constant 0 : index
    %c0_14 = arith.constant 0 : index
    %67 = vector.load %arg7[%c0_13, %c0_14] : memref<8x1xf32, #tpu.memory_space<vmem>>, vector<8x1xf32>
    %68 = vector.broadcast %67 : vector<8x1xf32> to vector<8x512xf32>
    %69 = arith.addf %66, %68 : vector<8x512xf32>
    %70 = arith.truncf %69 : vector<8x512xf32> to vector<8x512xbf16>
    %c0_15 = arith.constant 0 : index
    %c0_16 = arith.constant 0 : index
    %71 = vector.load %arg8[%c0_15, %c0_16] : memref<8x512xbf16, #tpu.memory_space<vmem>>, vector<8x512xbf16>
    tpu.vector_store %arg8[%c0_15, %c0_16], %70 {strides = array<i32>} : memref<8x512xbf16, #tpu.memory_space<vmem>>, vector<8x512xbf16>,
    %72 = arith.extf %70 : vector<8x512xbf16> to vector<8x512xf32>
    %cst_17 = arith.constant dense<0.000000e+00> : vector<8xf32>
    %73 = vector.multi_reduction <add>, %72, %cst_17 [1] : vector<8x512xf32> to vector<8xf32>
    %74 = vector.shape_cast %73 : vector<8xf32> to vector<8x1xf32>
    %75 = arith.mulf %72, %72 : vector<8x512xf32>
    %cst_18 = arith.constant dense<0.000000e+00> : vector<8xf32>
    %76 = vector.multi_reduction <add>, %75, %cst_18 [1] : vector<8x512xf32> to vector<8xf32>
    %77 = vector.shape_cast %76 : vector<8xf32> to vector<8x1xf32>
    %78 = tpu.concatenate %74, %77 in 1 : vector<8x1xf32>, vector<8x1xf32> -> vector<8x2xf32>
    %c0_19 = arith.constant 0 : index
    %c0_20 = arith.constant 0 : index
    %79 = vector.load %arg9[%c0_19, %c0_20] : memref<8x2xf32, #tpu.memory_space<vmem>>, vector<8x2xf32>
    tpu.vector_store %arg9[%c0_19, %c0_20], %78 {strides = array<i32>} : memref<8x2xf32, #tpu.memory_space<vmem>>, vector<8x2xf32>,
    return
  }
  func.func @transform_0(%arg0: i32) -> (i32, i32) {
    %c0_i32 = arith.constant 0 : i32
    %c0_i32_0 = arith.constant 0 : i32
    %c0_i32_1 = arith.constant 0 : i32
    return %c0_i32, %c0_i32_0 : i32, i32
  }
  func.func @transform_1(%arg0: i32) -> (i32, i32) {
    %c0_i32 = arith.constant 0 : i32
    %c0_i32_0 = arith.constant 0 : i32
    %c0_i32_1 = arith.constant 0 : i32
    return %c0_i32, %c0_i32_0 : i32, i32
  }
  func.func @transform_2(%arg0: i32) -> (i32, i32) {
    %c0_i32 = arith.constant 0 : i32
    %c0_i32_0 = arith.constant 0 : i32
    %c0_i32_1 = arith.constant 0 : i32
    return %c0_i32, %c0_i32_0 : i32, i32
  }
  func.func @transform_3(%arg0: i32) -> (i32, i32) {
    %c0_i32 = arith.constant 0 : i32
    %c0_i32_0 = arith.constant 0 : i32
    %c0_i32_1 = arith.constant 0 : i32
    return %c0_i32, %c0_i32_0 : i32, i32
  }
  func.func @transform_4(%arg0: i32) -> (i32, i32) {
    %c0_i32 = arith.constant 0 : i32
    %c0_i32_0 = arith.constant 0 : i32
    %c0_i32_1 = arith.constant 0 : i32
    return %c0_i32, %c0_i32_0 : i32, i32
  }
  func.func @transform_5(%arg0: i32) -> (i32, i32) {
    %c0_i32 = arith.constant 0 : i32
    %c0_i32_0 = arith.constant 0 : i32
    %c0_i32_1 = arith.constant 0 : i32
    return %c0_i32, %c0_i32_0 : i32, i32
  }
  func.func @transform_6(%arg0: i32) -> (i32, i32) {
    %c0_i32 = arith.constant 0 : i32
    %c0_i32_0 = arith.constant 0 : i32
    %c0_i32_1 = arith.constant 0 : i32
    return %c0_i32, %c0_i32_0 : i32, i32
  }
  func.func @transform_7(%arg0: i32) -> (i32, i32) {
    %c0_i32 = arith.constant 0 : i32
    %c0_i32_0 = arith.constant 0 : i32
    %c0_i32_1 = arith.constant 0 : i32
    return %c0_i32, %c0_i32_0 : i32, i32
  }
  func.func @transform_8(%arg0: i32) -> (i32, i32) {
    %c0_i32 = arith.constant 0 : i32
    %c0_i32_0 = arith.constant 0 : i32
    %c0_i32_1 = arith.constant 0 : i32
    return %c0_i32, %c0_i32_0 : i32, i32
  }
}

module attributes {stable_mosaic.version = 11 : i64} {
  func.func @upsample_stats_kernel(%arg0: i32, %arg1: memref<8x512xf32, #tpu.memory_space<vmem>>, %arg2: memref<4x512xf32, #tpu.memory_space<vmem>>, %arg3: memref<9x512xf32, #tpu.memory_space<vmem>>, %arg4: memref<4x72xf32, #tpu.memory_space<vmem>>, %arg5: memref<4x1xf32, #tpu.memory_space<vmem>>, %arg6: memref<4x512xbf16, #tpu.memory_space<vmem>>, %arg7: memref<8x2xf32, #tpu.memory_space<vmem>>) attributes {dimension_semantics = [#tpu.dimension_semantics<parallel>], iteration_bounds = array<i64: 1>, scalar_prefetch = 0 : i64, scratch_operands = 0 : i64, tpu.core_type = #tpu.core_type<tc>, window_params = [{pipeline_mode = #tpu.pipeline_mode<synchronous>, transform_indices = @transform_0, window_bounds = array<i64: 8, 512>}, {pipeline_mode = #tpu.pipeline_mode<synchronous>, transform_indices = @transform_1, window_bounds = array<i64: 4, 512>}, {pipeline_mode = #tpu.pipeline_mode<synchronous>, transform_indices = @transform_2, window_bounds = array<i64: 9, 512>}, {pipeline_mode = #tpu.pipeline_mode<synchronous>, transform_indices = @transform_3, window_bounds = array<i64: 4, 72>}, {pipeline_mode = #tpu.pipeline_mode<synchronous>, transform_indices = @transform_4, window_bounds = array<i64: 4, 1>}, {pipeline_mode = #tpu.pipeline_mode<synchronous>, transform_indices = @transform_5, window_bounds = array<i64: 4, 512>}, {pipeline_mode = #tpu.pipeline_mode<synchronous>, transform_indices = @transform_6, window_bounds = array<i64: 8, 2>}]} {
    %c0 = arith.constant 0 : index
    %c0_0 = arith.constant 0 : index
    %0 = vector.load %arg1[%c0, %c0_0] : memref<8x512xf32, #tpu.memory_space<vmem>>, vector<8x512xf32>
    %c0_1 = arith.constant 0 : index
    %c0_2 = arith.constant 0 : index
    %1 = vector.load %arg3[%c0_1, %c0_2] : memref<9x512xf32, #tpu.memory_space<vmem>>, vector<9x512xf32>
    %2 = vector.extract_strided_slice %0 {offsets = [0, 495], sizes = [8, 17], strides = [1, 1]} : vector<8x512xf32> to vector<8x17xf32>
    %3 = vector.extract_strided_slice %0 {offsets = [0, 0], sizes = [8, 495], strides = [1, 1]} : vector<8x512xf32> to vector<8x495xf32>
    %4 = tpu.concatenate %2, %3 in 1 : vector<8x17xf32>, vector<8x495xf32> -> vector<8x512xf32>
    %5 = vector.extract_strided_slice %1 {offsets = [0, 0], sizes = [1, 512], strides = [1, 1]} : vector<9x512xf32> to vector<1x512xf32>
    %6 = vector.broadcast %5 : vector<1x512xf32> to vector<8x512xf32>
    %7 = arith.mulf %4, %6 : vector<8x512xf32>
    %8 = vector.extract_strided_slice %0 {offsets = [0, 496], sizes = [8, 16], strides = [1, 1]} : vector<8x512xf32> to vector<8x16xf32>
    %9 = vector.extract_strided_slice %0 {offsets = [0, 0], sizes = [8, 496], strides = [1, 1]} : vector<8x512xf32> to vector<8x496xf32>
    %10 = tpu.concatenate %8, %9 in 1 : vector<8x16xf32>, vector<8x496xf32> -> vector<8x512xf32>
    %11 = vector.extract_strided_slice %1 {offsets = [1, 0], sizes = [1, 512], strides = [1, 1]} : vector<9x512xf32> to vector<1x512xf32>
    %12 = vector.broadcast %11 : vector<1x512xf32> to vector<8x512xf32>
    %13 = arith.mulf %10, %12 : vector<8x512xf32>
    %14 = vector.extract_strided_slice %0 {offsets = [0, 497], sizes = [8, 15], strides = [1, 1]} : vector<8x512xf32> to vector<8x15xf32>
    %15 = vector.extract_strided_slice %0 {offsets = [0, 0], sizes = [8, 497], strides = [1, 1]} : vector<8x512xf32> to vector<8x497xf32>
    %16 = tpu.concatenate %14, %15 in 1 : vector<8x15xf32>, vector<8x497xf32> -> vector<8x512xf32>
    %17 = vector.extract_strided_slice %1 {offsets = [2, 0], sizes = [1, 512], strides = [1, 1]} : vector<9x512xf32> to vector<1x512xf32>
    %18 = vector.broadcast %17 : vector<1x512xf32> to vector<8x512xf32>
    %19 = arith.mulf %16, %18 : vector<8x512xf32>
    %20 = vector.extract_strided_slice %0 {offsets = [0, 511], sizes = [8, 1], strides = [1, 1]} : vector<8x512xf32> to vector<8x1xf32>
    %21 = vector.extract_strided_slice %0 {offsets = [0, 0], sizes = [8, 511], strides = [1, 1]} : vector<8x512xf32> to vector<8x511xf32>
    %22 = tpu.concatenate %20, %21 in 1 : vector<8x1xf32>, vector<8x511xf32> -> vector<8x512xf32>
    %23 = vector.extract_strided_slice %1 {offsets = [3, 0], sizes = [1, 512], strides = [1, 1]} : vector<9x512xf32> to vector<1x512xf32>
    %24 = vector.broadcast %23 : vector<1x512xf32> to vector<8x512xf32>
    %25 = arith.mulf %22, %24 : vector<8x512xf32>
    %26 = vector.extract_strided_slice %0 {offsets = [0, 1], sizes = [8, 511], strides = [1, 1]} : vector<8x512xf32> to vector<8x511xf32>
    %27 = vector.extract_strided_slice %0 {offsets = [0, 0], sizes = [8, 1], strides = [1, 1]} : vector<8x512xf32> to vector<8x1xf32>
    %28 = tpu.concatenate %26, %27 in 1 : vector<8x511xf32>, vector<8x1xf32> -> vector<8x512xf32>
    %29 = vector.extract_strided_slice %1 {offsets = [5, 0], sizes = [1, 512], strides = [1, 1]} : vector<9x512xf32> to vector<1x512xf32>
    %30 = vector.broadcast %29 : vector<1x512xf32> to vector<8x512xf32>
    %31 = arith.mulf %28, %30 : vector<8x512xf32>
    %32 = vector.extract_strided_slice %0 {offsets = [0, 15], sizes = [8, 497], strides = [1, 1]} : vector<8x512xf32> to vector<8x497xf32>
    %33 = vector.extract_strided_slice %0 {offsets = [0, 0], sizes = [8, 15], strides = [1, 1]} : vector<8x512xf32> to vector<8x15xf32>
    %34 = tpu.concatenate %32, %33 in 1 : vector<8x497xf32>, vector<8x15xf32> -> vector<8x512xf32>
    %35 = vector.extract_strided_slice %1 {offsets = [6, 0], sizes = [1, 512], strides = [1, 1]} : vector<9x512xf32> to vector<1x512xf32>
    %36 = vector.broadcast %35 : vector<1x512xf32> to vector<8x512xf32>
    %37 = arith.mulf %34, %36 : vector<8x512xf32>
    %38 = vector.extract_strided_slice %0 {offsets = [0, 16], sizes = [8, 496], strides = [1, 1]} : vector<8x512xf32> to vector<8x496xf32>
    %39 = vector.extract_strided_slice %0 {offsets = [0, 0], sizes = [8, 16], strides = [1, 1]} : vector<8x512xf32> to vector<8x16xf32>
    %40 = tpu.concatenate %38, %39 in 1 : vector<8x496xf32>, vector<8x16xf32> -> vector<8x512xf32>
    %41 = vector.extract_strided_slice %1 {offsets = [7, 0], sizes = [1, 512], strides = [1, 1]} : vector<9x512xf32> to vector<1x512xf32>
    %42 = vector.broadcast %41 : vector<1x512xf32> to vector<8x512xf32>
    %43 = arith.mulf %40, %42 : vector<8x512xf32>
    %44 = vector.extract_strided_slice %0 {offsets = [0, 17], sizes = [8, 495], strides = [1, 1]} : vector<8x512xf32> to vector<8x495xf32>
    %45 = vector.extract_strided_slice %0 {offsets = [0, 0], sizes = [8, 17], strides = [1, 1]} : vector<8x512xf32> to vector<8x17xf32>
    %46 = tpu.concatenate %44, %45 in 1 : vector<8x495xf32>, vector<8x17xf32> -> vector<8x512xf32>
    %47 = vector.extract_strided_slice %1 {offsets = [8, 0], sizes = [1, 512], strides = [1, 1]} : vector<9x512xf32> to vector<1x512xf32>
    %48 = vector.broadcast %47 : vector<1x512xf32> to vector<8x512xf32>
    %49 = arith.mulf %46, %48 : vector<8x512xf32>
    %50 = tpu.concatenate %7, %13, %19, %25, %0, %31, %37, %43, %49 in 0 : vector<8x512xf32>, vector<8x512xf32>, vector<8x512xf32>, vector<8x512xf32>, vector<8x512xf32>, vector<8x512xf32>, vector<8x512xf32>, vector<8x512xf32>, vector<8x512xf32> -> vector<72x512xf32>
    %c0_3 = arith.constant 0 : index
    %c0_4 = arith.constant 0 : index
    %51 = vector.load %arg4[%c0_3, %c0_4] : memref<4x72xf32, #tpu.memory_space<vmem>>, vector<4x72xf32>
    %cst = arith.constant dense<0.000000e+00> : vector<4x512xf32>
    %52 = tpu.matmul %51, %50, %cst {dimension_numbers = #tpu.dot_dimension_numbers<[1], [0], [0], [1], [0, 0, 1, 1], [], []>} : vector<4x72xf32>, vector<72x512xf32>, vector<4x512xf32> -> vector<4x512xf32>
    %c0_5 = arith.constant 0 : index
    %c0_6 = arith.constant 0 : index
    %53 = vector.load %arg5[%c0_5, %c0_6] : memref<4x1xf32, #tpu.memory_space<vmem>>, vector<4x1xf32>
    %54 = vector.broadcast %53 : vector<4x1xf32> to vector<4x512xf32>
    %55 = arith.addf %52, %54 : vector<4x512xf32>
    %56 = arith.truncf %55 : vector<4x512xf32> to vector<4x512xbf16>
    %c0_7 = arith.constant 0 : index
    %c0_8 = arith.constant 0 : index
    %57 = vector.load %arg6[%c0_7, %c0_8] : memref<4x512xbf16, #tpu.memory_space<vmem>>, vector<4x512xbf16>
    tpu.vector_store %arg6[%c0_7, %c0_8], %56 {strides = array<i32>} : memref<4x512xbf16, #tpu.memory_space<vmem>>, vector<4x512xbf16>,
    %58 = arith.extf %56 : vector<4x512xbf16> to vector<4x512xf32>
    %c0_9 = arith.constant 0 : index
    %c0_10 = arith.constant 0 : index
    %59 = vector.load %arg2[%c0_9, %c0_10] : memref<4x512xf32, #tpu.memory_space<vmem>>, vector<4x512xf32>
    %cst_11 = arith.constant dense<0.000000e+00> : vector<4xf32>
    %60 = vector.multi_reduction <add>, %58, %cst_11 [1] : vector<4x512xf32> to vector<4xf32>
    %61 = vector.shape_cast %60 : vector<4xf32> to vector<4x1xf32>
    %cst_12 = arith.constant dense<0.000000e+00> : vector<4xf32>
    %62 = vector.multi_reduction <add>, %59, %cst_12 [1] : vector<4x512xf32> to vector<4xf32>
    %63 = vector.shape_cast %62 : vector<4xf32> to vector<4x1xf32>
    %64 = tpu.concatenate %61, %63 in 0 : vector<4x1xf32>, vector<4x1xf32> -> vector<8x1xf32>
    %65 = arith.mulf %58, %58 : vector<4x512xf32>
    %cst_13 = arith.constant dense<0.000000e+00> : vector<4xf32>
    %66 = vector.multi_reduction <add>, %65, %cst_13 [1] : vector<4x512xf32> to vector<4xf32>
    %67 = vector.shape_cast %66 : vector<4xf32> to vector<4x1xf32>
    %68 = arith.mulf %59, %59 : vector<4x512xf32>
    %cst_14 = arith.constant dense<0.000000e+00> : vector<4xf32>
    %69 = vector.multi_reduction <add>, %68, %cst_14 [1] : vector<4x512xf32> to vector<4xf32>
    %70 = vector.shape_cast %69 : vector<4xf32> to vector<4x1xf32>
    %71 = tpu.concatenate %67, %70 in 0 : vector<4x1xf32>, vector<4x1xf32> -> vector<8x1xf32>
    %72 = tpu.concatenate %64, %71 in 1 : vector<8x1xf32>, vector<8x1xf32> -> vector<8x2xf32>
    %c0_15 = arith.constant 0 : index
    %c0_16 = arith.constant 0 : index
    %73 = vector.load %arg7[%c0_15, %c0_16] : memref<8x2xf32, #tpu.memory_space<vmem>>, vector<8x2xf32>
    tpu.vector_store %arg7[%c0_15, %c0_16], %72 {strides = array<i32>} : memref<8x2xf32, #tpu.memory_space<vmem>>, vector<8x2xf32>,
    return
  }
  func.func @transform_0(%arg0: i32) -> (i32, i32) {
    %c0_i32 = arith.constant 0 : i32
    %c0_i32_0 = arith.constant 0 : i32
    %c0_i32_1 = arith.constant 0 : i32
    return %c0_i32, %c0_i32_0 : i32, i32
  }
  func.func @transform_1(%arg0: i32) -> (i32, i32) {
    %c0_i32 = arith.constant 0 : i32
    %c0_i32_0 = arith.constant 0 : i32
    %c0_i32_1 = arith.constant 0 : i32
    return %c0_i32, %c0_i32_0 : i32, i32
  }
  func.func @transform_2(%arg0: i32) -> (i32, i32) {
    %c0_i32 = arith.constant 0 : i32
    %c0_i32_0 = arith.constant 0 : i32
    %c0_i32_1 = arith.constant 0 : i32
    return %c0_i32, %c0_i32_0 : i32, i32
  }
  func.func @transform_3(%arg0: i32) -> (i32, i32) {
    %c0_i32 = arith.constant 0 : i32
    %c0_i32_0 = arith.constant 0 : i32
    %c0_i32_1 = arith.constant 0 : i32
    return %c0_i32, %c0_i32_0 : i32, i32
  }
  func.func @transform_4(%arg0: i32) -> (i32, i32) {
    %c0_i32 = arith.constant 0 : i32
    %c0_i32_0 = arith.constant 0 : i32
    %c0_i32_1 = arith.constant 0 : i32
    return %c0_i32, %c0_i32_0 : i32, i32
  }
  func.func @transform_5(%arg0: i32) -> (i32, i32) {
    %c0_i32 = arith.constant 0 : i32
    %c0_i32_0 = arith.constant 0 : i32
    %c0_i32_1 = arith.constant 0 : i32
    return %c0_i32, %c0_i32_0 : i32, i32
  }
  func.func @transform_6(%arg0: i32) -> (i32, i32) {
    %c0_i32 = arith.constant 0 : i32
    %c0_i32_0 = arith.constant 0 : i32
    %c0_i32_1 = arith.constant 0 : i32
    return %c0_i32, %c0_i32_0 : i32, i32
  }
}

module attributes {stable_mosaic.version = 11 : i64} {
  func.func @conv2_residual_kernel(%arg0: i32, %arg1: memref<8x512xbf16, #tpu.memory_space<vmem>>, %arg2: memref<4x512xbf16, #tpu.memory_space<vmem>>, %arg3: memref<4x512xf32, #tpu.memory_space<vmem>>, %arg4: memref<9x512xf32, #tpu.memory_space<vmem>>, %arg5: memref<8x1xf32, #tpu.memory_space<vmem>>, %arg6: memref<8x1xf32, #tpu.memory_space<vmem>>, %arg7: memref<8x1xf32, #tpu.memory_space<vmem>>, %arg8: memref<8x1xf32, #tpu.memory_space<vmem>>, %arg9: memref<8x72xf32, #tpu.memory_space<vmem>>, %arg10: memref<8x1xf32, #tpu.memory_space<vmem>>, %arg11: memref<8x8xf32, #tpu.memory_space<vmem>>, %arg12: memref<8x1xf32, #tpu.memory_space<vmem>>, %arg13: memref<8x512xf32, #tpu.memory_space<vmem>>) attributes {dimension_semantics = [#tpu.dimension_semantics<parallel>], iteration_bounds = array<i64: 1>, scalar_prefetch = 0 : i64, scratch_operands = 0 : i64, tpu.core_type = #tpu.core_type<tc>, window_params = [{pipeline_mode = #tpu.pipeline_mode<synchronous>, transform_indices = @transform_0, window_bounds = array<i64: 8, 512>}, {pipeline_mode = #tpu.pipeline_mode<synchronous>, transform_indices = @transform_1, window_bounds = array<i64: 4, 512>}, {pipeline_mode = #tpu.pipeline_mode<synchronous>, transform_indices = @transform_2, window_bounds = array<i64: 4, 512>}, {pipeline_mode = #tpu.pipeline_mode<synchronous>, transform_indices = @transform_3, window_bounds = array<i64: 9, 512>}, {pipeline_mode = #tpu.pipeline_mode<synchronous>, transform_indices = @transform_4, window_bounds = array<i64: 8, 1>}, {pipeline_mode = #tpu.pipeline_mode<synchronous>, transform_indices = @transform_5, window_bounds = array<i64: 8, 1>}, {pipeline_mode = #tpu.pipeline_mode<synchronous>, transform_indices = @transform_6, window_bounds = array<i64: 8, 1>}, {pipeline_mode = #tpu.pipeline_mode<synchronous>, transform_indices = @transform_7, window_bounds = array<i64: 8, 1>}, {pipeline_mode = #tpu.pipeline_mode<synchronous>, transform_indices = @transform_8, window_bounds = array<i64: 8, 72>}, {pipeline_mode = #tpu.pipeline_mode<synchronous>, transform_indices = @transform_9, window_bounds = array<i64: 8, 1>}, {pipeline_mode = #tpu.pipeline_mode<synchronous>, transform_indices = @transform_10, window_bounds = array<i64: 8, 8>}, {pipeline_mode = #tpu.pipeline_mode<synchronous>, transform_indices = @transform_11, window_bounds = array<i64: 8, 1>}, {pipeline_mode = #tpu.pipeline_mode<synchronous>, transform_indices = @transform_12, window_bounds = array<i64: 8, 512>}]} {
    %c0 = arith.constant 0 : index
    %c0_0 = arith.constant 0 : index
    %0 = vector.load %arg1[%c0, %c0_0] : memref<8x512xbf16, #tpu.memory_space<vmem>>, vector<8x512xbf16>
    %1 = arith.extf %0 : vector<8x512xbf16> to vector<8x512xf32>
    %c0_1 = arith.constant 0 : index
    %c0_2 = arith.constant 0 : index
    %2 = vector.load %arg7[%c0_1, %c0_2] : memref<8x1xf32, #tpu.memory_space<vmem>>, vector<8x1xf32>
    %3 = vector.broadcast %2 : vector<8x1xf32> to vector<8x512xf32>
    %4 = arith.mulf %1, %3 : vector<8x512xf32>
    %c0_3 = arith.constant 0 : index
    %c0_4 = arith.constant 0 : index
    %5 = vector.load %arg8[%c0_3, %c0_4] : memref<8x1xf32, #tpu.memory_space<vmem>>, vector<8x1xf32>
    %6 = vector.broadcast %5 : vector<8x1xf32> to vector<8x512xf32>
    %7 = arith.addf %4, %6 : vector<8x512xf32>
    %cst = arith.constant 0.000000e+00 : f32
    %8 = vector.broadcast %cst : f32 to vector<8x512xf32>
    %9 = arith.cmpf ogt, %7, %8 : vector<8x512xf32>
    %cst_5 = arith.constant 2.000000e-01 : f32
    %10 = vector.broadcast %cst_5 : f32 to vector<8x512xf32>
    %11 = arith.mulf %10, %7 : vector<8x512xf32>
    %12 = arith.select %9, %7, %11 : vector<8x512xi1>, vector<8x512xf32>
    %c0_6 = arith.constant 0 : index
    %c0_7 = arith.constant 0 : index
    %13 = vector.load %arg4[%c0_6, %c0_7] : memref<9x512xf32, #tpu.memory_space<vmem>>, vector<9x512xf32>
    %14 = vector.extract_strided_slice %12 {offsets = [0, 495], sizes = [8, 17], strides = [1, 1]} : vector<8x512xf32> to vector<8x17xf32>
    %15 = vector.extract_strided_slice %12 {offsets = [0, 0], sizes = [8, 495], strides = [1, 1]} : vector<8x512xf32> to vector<8x495xf32>
    %16 = tpu.concatenate %14, %15 in 1 : vector<8x17xf32>, vector<8x495xf32> -> vector<8x512xf32>
    %17 = vector.extract_strided_slice %13 {offsets = [0, 0], sizes = [1, 512], strides = [1, 1]} : vector<9x512xf32> to vector<1x512xf32>
    %18 = vector.broadcast %17 : vector<1x512xf32> to vector<8x512xf32>
    %19 = arith.mulf %16, %18 : vector<8x512xf32>
    %20 = vector.extract_strided_slice %12 {offsets = [0, 496], sizes = [8, 16], strides = [1, 1]} : vector<8x512xf32> to vector<8x16xf32>
    %21 = vector.extract_strided_slice %12 {offsets = [0, 0], sizes = [8, 496], strides = [1, 1]} : vector<8x512xf32> to vector<8x496xf32>
    %22 = tpu.concatenate %20, %21 in 1 : vector<8x16xf32>, vector<8x496xf32> -> vector<8x512xf32>
    %23 = vector.extract_strided_slice %13 {offsets = [1, 0], sizes = [1, 512], strides = [1, 1]} : vector<9x512xf32> to vector<1x512xf32>
    %24 = vector.broadcast %23 : vector<1x512xf32> to vector<8x512xf32>
    %25 = arith.mulf %22, %24 : vector<8x512xf32>
    %26 = vector.extract_strided_slice %12 {offsets = [0, 497], sizes = [8, 15], strides = [1, 1]} : vector<8x512xf32> to vector<8x15xf32>
    %27 = vector.extract_strided_slice %12 {offsets = [0, 0], sizes = [8, 497], strides = [1, 1]} : vector<8x512xf32> to vector<8x497xf32>
    %28 = tpu.concatenate %26, %27 in 1 : vector<8x15xf32>, vector<8x497xf32> -> vector<8x512xf32>
    %29 = vector.extract_strided_slice %13 {offsets = [2, 0], sizes = [1, 512], strides = [1, 1]} : vector<9x512xf32> to vector<1x512xf32>
    %30 = vector.broadcast %29 : vector<1x512xf32> to vector<8x512xf32>
    %31 = arith.mulf %28, %30 : vector<8x512xf32>
    %32 = vector.extract_strided_slice %12 {offsets = [0, 511], sizes = [8, 1], strides = [1, 1]} : vector<8x512xf32> to vector<8x1xf32>
    %33 = vector.extract_strided_slice %12 {offsets = [0, 0], sizes = [8, 511], strides = [1, 1]} : vector<8x512xf32> to vector<8x511xf32>
    %34 = tpu.concatenate %32, %33 in 1 : vector<8x1xf32>, vector<8x511xf32> -> vector<8x512xf32>
    %35 = vector.extract_strided_slice %13 {offsets = [3, 0], sizes = [1, 512], strides = [1, 1]} : vector<9x512xf32> to vector<1x512xf32>
    %36 = vector.broadcast %35 : vector<1x512xf32> to vector<8x512xf32>
    %37 = arith.mulf %34, %36 : vector<8x512xf32>
    %38 = vector.extract_strided_slice %12 {offsets = [0, 1], sizes = [8, 511], strides = [1, 1]} : vector<8x512xf32> to vector<8x511xf32>
    %39 = vector.extract_strided_slice %12 {offsets = [0, 0], sizes = [8, 1], strides = [1, 1]} : vector<8x512xf32> to vector<8x1xf32>
    %40 = tpu.concatenate %38, %39 in 1 : vector<8x511xf32>, vector<8x1xf32> -> vector<8x512xf32>
    %41 = vector.extract_strided_slice %13 {offsets = [5, 0], sizes = [1, 512], strides = [1, 1]} : vector<9x512xf32> to vector<1x512xf32>
    %42 = vector.broadcast %41 : vector<1x512xf32> to vector<8x512xf32>
    %43 = arith.mulf %40, %42 : vector<8x512xf32>
    %44 = vector.extract_strided_slice %12 {offsets = [0, 15], sizes = [8, 497], strides = [1, 1]} : vector<8x512xf32> to vector<8x497xf32>
    %45 = vector.extract_strided_slice %12 {offsets = [0, 0], sizes = [8, 15], strides = [1, 1]} : vector<8x512xf32> to vector<8x15xf32>
    %46 = tpu.concatenate %44, %45 in 1 : vector<8x497xf32>, vector<8x15xf32> -> vector<8x512xf32>
    %47 = vector.extract_strided_slice %13 {offsets = [6, 0], sizes = [1, 512], strides = [1, 1]} : vector<9x512xf32> to vector<1x512xf32>
    %48 = vector.broadcast %47 : vector<1x512xf32> to vector<8x512xf32>
    %49 = arith.mulf %46, %48 : vector<8x512xf32>
    %50 = vector.extract_strided_slice %12 {offsets = [0, 16], sizes = [8, 496], strides = [1, 1]} : vector<8x512xf32> to vector<8x496xf32>
    %51 = vector.extract_strided_slice %12 {offsets = [0, 0], sizes = [8, 16], strides = [1, 1]} : vector<8x512xf32> to vector<8x16xf32>
    %52 = tpu.concatenate %50, %51 in 1 : vector<8x496xf32>, vector<8x16xf32> -> vector<8x512xf32>
    %53 = vector.extract_strided_slice %13 {offsets = [7, 0], sizes = [1, 512], strides = [1, 1]} : vector<9x512xf32> to vector<1x512xf32>
    %54 = vector.broadcast %53 : vector<1x512xf32> to vector<8x512xf32>
    %55 = arith.mulf %52, %54 : vector<8x512xf32>
    %56 = vector.extract_strided_slice %12 {offsets = [0, 17], sizes = [8, 495], strides = [1, 1]} : vector<8x512xf32> to vector<8x495xf32>
    %57 = vector.extract_strided_slice %12 {offsets = [0, 0], sizes = [8, 17], strides = [1, 1]} : vector<8x512xf32> to vector<8x17xf32>
    %58 = tpu.concatenate %56, %57 in 1 : vector<8x495xf32>, vector<8x17xf32> -> vector<8x512xf32>
    %59 = vector.extract_strided_slice %13 {offsets = [8, 0], sizes = [1, 512], strides = [1, 1]} : vector<9x512xf32> to vector<1x512xf32>
    %60 = vector.broadcast %59 : vector<1x512xf32> to vector<8x512xf32>
    %61 = arith.mulf %58, %60 : vector<8x512xf32>
    %62 = tpu.concatenate %19, %25, %31, %37, %12, %43, %49, %55, %61 in 0 : vector<8x512xf32>, vector<8x512xf32>, vector<8x512xf32>, vector<8x512xf32>, vector<8x512xf32>, vector<8x512xf32>, vector<8x512xf32>, vector<8x512xf32>, vector<8x512xf32> -> vector<72x512xf32>
    %c0_8 = arith.constant 0 : index
    %c0_9 = arith.constant 0 : index
    %63 = vector.load %arg9[%c0_8, %c0_9] : memref<8x72xf32, #tpu.memory_space<vmem>>, vector<8x72xf32>
    %cst_10 = arith.constant dense<0.000000e+00> : vector<8x512xf32>
    %64 = tpu.matmul %63, %62, %cst_10 {dimension_numbers = #tpu.dot_dimension_numbers<[1], [0], [0], [1], [0, 0, 1, 1], [], []>} : vector<8x72xf32>, vector<72x512xf32>, vector<8x512xf32> -> vector<8x512xf32>
    %c0_11 = arith.constant 0 : index
    %c0_12 = arith.constant 0 : index
    %65 = vector.load %arg10[%c0_11, %c0_12] : memref<8x1xf32, #tpu.memory_space<vmem>>, vector<8x1xf32>
    %66 = vector.broadcast %65 : vector<8x1xf32> to vector<8x512xf32>
    %67 = arith.addf %64, %66 : vector<8x512xf32>
    %c0_13 = arith.constant 0 : index
    %c0_14 = arith.constant 0 : index
    %68 = vector.load %arg2[%c0_13, %c0_14] : memref<4x512xbf16, #tpu.memory_space<vmem>>, vector<4x512xbf16>
    %69 = arith.extf %68 : vector<4x512xbf16> to vector<4x512xf32>
    %c0_15 = arith.constant 0 : index
    %c0_16 = arith.constant 0 : index
    %70 = vector.load %arg3[%c0_15, %c0_16] : memref<4x512xf32, #tpu.memory_space<vmem>>, vector<4x512xf32>
    %71 = tpu.concatenate %69, %70 in 0 : vector<4x512xf32>, vector<4x512xf32> -> vector<8x512xf32>
    %c0_17 = arith.constant 0 : index
    %c0_18 = arith.constant 0 : index
    %72 = vector.load %arg5[%c0_17, %c0_18] : memref<8x1xf32, #tpu.memory_space<vmem>>, vector<8x1xf32>
    %73 = vector.broadcast %72 : vector<8x1xf32> to vector<8x512xf32>
    %74 = arith.mulf %71, %73 : vector<8x512xf32>
    %c0_19 = arith.constant 0 : index
    %c0_20 = arith.constant 0 : index
    %75 = vector.load %arg6[%c0_19, %c0_20] : memref<8x1xf32, #tpu.memory_space<vmem>>, vector<8x1xf32>
    %76 = vector.broadcast %75 : vector<8x1xf32> to vector<8x512xf32>
    %77 = arith.addf %74, %76 : vector<8x512xf32>
    %c0_21 = arith.constant 0 : index
    %c0_22 = arith.constant 0 : index
    %78 = vector.load %arg11[%c0_21, %c0_22] : memref<8x8xf32, #tpu.memory_space<vmem>>, vector<8x8xf32>
    %cst_23 = arith.constant dense<0.000000e+00> : vector<8x512xf32>
    %79 = tpu.matmul %78, %77, %cst_23 {dimension_numbers = #tpu.dot_dimension_numbers<[1], [0], [0], [1], [0, 0, 1, 1], [], []>} : vector<8x8xf32>, vector<8x512xf32>, vector<8x512xf32> -> vector<8x512xf32>
    %c0_24 = arith.constant 0 : index
    %c0_25 = arith.constant 0 : index
    %80 = vector.load %arg12[%c0_24, %c0_25] : memref<8x1xf32, #tpu.memory_space<vmem>>, vector<8x1xf32>
    %81 = vector.broadcast %80 : vector<8x1xf32> to vector<8x512xf32>
    %82 = arith.addf %79, %81 : vector<8x512xf32>
    %83 = arith.addf %67, %82 : vector<8x512xf32>
    %c0_26 = arith.constant 0 : index
    %c0_27 = arith.constant 0 : index
    %84 = vector.load %arg13[%c0_26, %c0_27] : memref<8x512xf32, #tpu.memory_space<vmem>>, vector<8x512xf32>
    tpu.vector_store %arg13[%c0_26, %c0_27], %83 {strides = array<i32>} : memref<8x512xf32, #tpu.memory_space<vmem>>, vector<8x512xf32>,
    return
  }
  func.func @transform_0(%arg0: i32) -> (i32, i32) {
    %c0_i32 = arith.constant 0 : i32
    %c0_i32_0 = arith.constant 0 : i32
    %c0_i32_1 = arith.constant 0 : i32
    return %c0_i32, %c0_i32_0 : i32, i32
  }
  func.func @transform_1(%arg0: i32) -> (i32, i32) {
    %c0_i32 = arith.constant 0 : i32
    %c0_i32_0 = arith.constant 0 : i32
    %c0_i32_1 = arith.constant 0 : i32
    return %c0_i32, %c0_i32_0 : i32, i32
  }
  func.func @transform_2(%arg0: i32) -> (i32, i32) {
    %c0_i32 = arith.constant 0 : i32
    %c0_i32_0 = arith.constant 0 : i32
    %c0_i32_1 = arith.constant 0 : i32
    return %c0_i32, %c0_i32_0 : i32, i32
  }
  func.func @transform_3(%arg0: i32) -> (i32, i32) {
    %c0_i32 = arith.constant 0 : i32
    %c0_i32_0 = arith.constant 0 : i32
    %c0_i32_1 = arith.constant 0 : i32
    return %c0_i32, %c0_i32_0 : i32, i32
  }
  func.func @transform_4(%arg0: i32) -> (i32, i32) {
    %c0_i32 = arith.constant 0 : i32
    %c0_i32_0 = arith.constant 0 : i32
    %c0_i32_1 = arith.constant 0 : i32
    return %c0_i32, %c0_i32_0 : i32, i32
  }
  func.func @transform_5(%arg0: i32) -> (i32, i32) {
    %c0_i32 = arith.constant 0 : i32
    %c0_i32_0 = arith.constant 0 : i32
    %c0_i32_1 = arith.constant 0 : i32
    return %c0_i32, %c0_i32_0 : i32, i32
  }
  func.func @transform_6(%arg0: i32) -> (i32, i32) {
    %c0_i32 = arith.constant 0 : i32
    %c0_i32_0 = arith.constant 0 : i32
    %c0_i32_1 = arith.constant 0 : i32
    return %c0_i32, %c0_i32_0 : i32, i32
  }
  func.func @transform_7(%arg0: i32) -> (i32, i32) {
    %c0_i32 = arith.constant 0 : i32
    %c0_i32_0 = arith.constant 0 : i32
    %c0_i32_1 = arith.constant 0 : i32
    return %c0_i32, %c0_i32_0 : i32, i32
  }
  func.func @transform_8(%arg0: i32) -> (i32, i32) {
    %c0_i32 = arith.constant 0 : i32
    %c0_i32_0 = arith.constant 0 : i32
    %c0_i32_1 = arith.constant 0 : i32
    return %c0_i32, %c0_i32_0 : i32, i32
  }
  func.func @transform_9(%arg0: i32) -> (i32, i32) {
    %c0_i32 = arith.constant 0 : i32
    %c0_i32_0 = arith.constant 0 : i32
    %c0_i32_1 = arith.constant 0 : i32
    return %c0_i32, %c0_i32_0 : i32, i32
  }
  func.func @transform_10(%arg0: i32) -> (i32, i32) {
    %c0_i32 = arith.constant 0 : i32
    %c0_i32_0 = arith.constant 0 : i32
    %c0_i32_1 = arith.constant 0 : i32
    return %c0_i32, %c0_i32_0 : i32, i32
  }
  func.func @transform_11(%arg0: i32) -> (i32, i32) {
    %c0_i32 = arith.constant 0 : i32
    %c0_i32_0 = arith.constant 0 : i32
    %c0_i32_1 = arith.constant 0 : i32
    return %c0_i32, %c0_i32_0 : i32, i32
  }
  func.func @transform_12(%arg0: i32) -> (i32, i32) {
    %c0_i32 = arith.constant 0 : i32
    %c0_i32_0 = arith.constant 0 : i32
    %c0_i32_1 = arith.constant 0 : i32
    return %c0_i32, %c0_i32_0 : i32, i32
  }
}

</mosaic_0001>

<llo_original>
// kernel: tpu_custom_call.1
$region0: #{tpu_custom_call.1}
  #allocation0 [shape = 'u32[]', space=smem, size = 0x4, offset = 0x4, fixed_abs, tag = 'smem constant byte address 0x4 - core index']
  #allocation1 [shape = 'u32[144,128]{1,0:T(1,128)}', space=vmem, size = 0x12000, scoped, tag = 'internal scratch']
  %s0 = inlined_call_operand.hbm [shape: f32[8,128], index: 0, kind: input, shape index: {}]
  %s1 = inlined_call_operand.hbm [shape: f32[8,128], index: 1, kind: output, shape index: {}]
  %s2 = sld [smem:[#allocation0]]
  $region18: #{tpu_custom_call.1} parent=0
    _
  %s4 = ssub.s32 1, %s2
  %s5 = scalar_select 0, %s4, %s2
  $region1: #{tpu_custom_call.1} parent=0
    #allocation2 [shape = 'u8[4096]{0}', space=vmem, size = 0x1000, scoped, tag = 'input window, operand 0, single buffered']
    #allocation3 [shape = 's32[1]{0}', space=sflag, size = 0x4, scoped, tag = 'scoped memory for tpu_custom_call.1']
    #allocation4 [shape = 's32[1]{0}', space=sflag, size = 0x4, scoped, tag = 'scoped memory for tpu_custom_call.1']
    #allocation5 [shape = 'u8[4096]{0}', space=vmem, size = 0x1000, scoped, tag = 'output window, operand 0, single buffered']
    %6 = vsyncpa [#allocation3], 0
    %7 = vsyncpa [#allocation4], 0
    // Predicated region
    $region2: #{tpu_custom_call.1} parent=1 // pred_check
      _
    $region3: #{tpu_custom_call.1} parent=1 // pred_check_branch
      %9 = sbr.rel (0) target = $region5
    $region4: #{tpu_custom_call.1} parent=1 // pred_region
      %s11 = ssub.s32 128, 128
      %12 = vsyncadd [#allocation3], %s11
      %s14 = sshll.u32 [#allocation2], 4
      %s15 = int_to_ptr.vmem [resolvable:$true] %s14
      %17 = dma.hbm_to_vmem [thread:$0]  %s0, 128, %s15, [#allocation3]
    $region5: #{tpu_custom_call.1} parent=1 // pred_fallthru
      _
    // Predicated region
    $region6: #{tpu_custom_call.1} parent=1 // pred_check
      _
    $region7: #{tpu_custom_call.1} parent=1 // pred_check_branch
      %19 = sbr.rel (0) target = $region9
    $region8: #{tpu_custom_call.1} parent=1 // pred_region
      %20 = dma.done [#allocation3], 128
    $region9: #{tpu_custom_call.1} parent=1 // pred_fallthru
      _
    %v21 = vld [vmem:[#allocation2] sm:$0xff]
    %22 = vrot.lane.b32.xlu0 %v21, 1
    %v23 = vpop.permute.xlu0 %22
    %24 = vst [vmem:[#allocation5] sm:$0xff] %v23
    // Predicated region
    $region10: #{tpu_custom_call.1} parent=1 // pred_check
      _
    $region11: #{tpu_custom_call.1} parent=1 // pred_check_branch
      %26 = sbr.rel (0) target = $region13
    $region12: #{tpu_custom_call.1} parent=1 // pred_region
      %s28 = ssub.s32 128, 128
      %29 = vsyncadd [#allocation4], %s28
      %s31 = sshll.u32 [#allocation5], 4
      %s32 = int_to_ptr.vmem [resolvable:$true] %s31
      %34 = dma.vmem_to_hbm [thread:$0]  %s32, 128, %s1, [#allocation4]
    $region13: #{tpu_custom_call.1} parent=1 // pred_fallthru
      _
    // Predicated region
    $region14: #{tpu_custom_call.1} parent=1 // pred_check
      _
    $region15: #{tpu_custom_call.1} parent=1 // pred_check_branch
      %36 = sbr.rel (0) target = $region17
    $region16: #{tpu_custom_call.1} parent=1 // pred_region
      %37 = dma.done [#allocation4], 128
    $region17: #{tpu_custom_call.1} parent=1 // pred_fallthru
      _
    %38 = vsyncpa [#allocation3], 1
    %39 = vsyncpa [#allocation4], 1

// kernel: _forward_impl.4
$region0: #{_forward_impl.4}
  #allocation0 [shape = 'u32[]', space=smem, size = 0x4, offset = 0x4, fixed_abs, tag = 'smem constant byte address 0x4 - core index']
  #allocation1 [shape = 'u32[144,128]{1,0:T(1,128)}', space=vmem, size = 0x12000, scoped, tag = 'internal scratch']
  %s0 = inlined_call_operand.vmem [shape: bf16[4,512], index: 0, kind: input, shape index: {}]
  %s1 = inlined_call_operand.vmem [shape: f32[4,512], index: 1, kind: input, shape index: {}]
  %s2 = inlined_call_operand.vmem [shape: f32[9,512], index: 2, kind: input, shape index: {}]
  %s3 = inlined_call_operand.vmem [shape: f32[8,1], index: 3, kind: input, shape index: {}]
  %s4 = inlined_call_operand.vmem [shape: f32[8,1], index: 4, kind: input, shape index: {}]
  %s5 = inlined_call_operand.vmem [shape: f32[8,72], index: 5, kind: input, shape index: {}]
  %s6 = inlined_call_operand.vmem [shape: f32[8,1], index: 6, kind: input, shape index: {}]
  %s7 = inlined_call_operand.vmem [shape: bf16[8,512], index: 7, kind: output, shape index: {0}]
  %s8 = inlined_call_operand.vmem [shape: f32[8,2], index: 8, kind: output, shape index: {1}]
  %9 = xla_tuple %s7, %s8
  %s10 = sld [smem:[#allocation0]]
  $region46: #{_forward_impl.4} parent=0
    _
  %s12 = ssub.s32 1, %s10
  %s13 = scalar_select 0, %s12, %s10
  // Predicated region
  $region2: #{_forward_impl.4} parent=0 // pred_check
    _
  $region3: #{_forward_impl.4} parent=0 // pred_check_branch
    %15 = sbr.rel (0) target = $region5
  $region4: #{_forward_impl.4} parent=0 // pred_region
    _
  $region5: #{_forward_impl.4} parent=0 // pred_fallthru
    _
  // Predicated region
  $region6: #{_forward_impl.4} parent=0 // pred_check
    _
  $region7: #{_forward_impl.4} parent=0 // pred_check_branch
    %17 = sbr.rel (0) target = $region9
  $region8: #{_forward_impl.4} parent=0 // pred_region
    _
  $region9: #{_forward_impl.4} parent=0 // pred_fallthru
    _
  // Predicated region
  $region10: #{_forward_impl.4} parent=0 // pred_check
    _
  $region11: #{_forward_impl.4} parent=0 // pred_check_branch
    %19 = sbr.rel (0) target = $region13
  $region12: #{_forward_impl.4} parent=0 // pred_region
    _
  $region13: #{_forward_impl.4} parent=0 // pred_fallthru
    _
  // Predicated region
  $region14: #{_forward_impl.4} parent=0 // pred_check
    _
  $region15: #{_forward_impl.4} parent=0 // pred_check_branch
    %21 = sbr.rel (0) target = $region17
  $region16: #{_forward_impl.4} parent=0 // pred_region
    _
  $region17: #{_forward_impl.4} parent=0 // pred_fallthru
    _
  // Predicated region
  $region18: #{_forward_impl.4} parent=0 // pred_check
    _
  $region19: #{_forward_impl.4} parent=0 // pred_check_branch
    %23 = sbr.rel (0) target = $region21
  $region20: #{_forward_impl.4} parent=0 // pred_region
    _
  $region21: #{_forward_impl.4} parent=0 // pred_fallthru
    _
  // Predicated region
  $region22: #{_forward_impl.4} parent=0 // pred_check
    _
  $region23: #{_forward_impl.4} parent=0 // pred_check_branch
    %25 = sbr.rel (0) target = $region25
  $region24: #{_forward_impl.4} parent=0 // pred_region
    _
  $region25: #{_forward_impl.4} parent=0 // pred_fallthru
    _
  // Predicated region
  $region26: #{_forward_impl.4} parent=0 // pred_check
    _
  $region27: #{_forward_impl.4} parent=0 // pred_check_branch
    %27 = sbr.rel (0) target = $region29
  $region28: #{_forward_impl.4} parent=0 // pred_region
    _
  $region29: #{_forward_impl.4} parent=0 // pred_fallthru
    _
  %v28 = vld [vmem:[%s0] sm:$0xff]
  %v29 = vunpack.c.l.bf16 %v28
  %v30 = vunpack.c.h.bf16 %v28
  %v31 = vld [vmem:[%s1] sm:$0xff]
  %v32 = vld [vmem:[%s1 + $0x8] sm:$0xff]
  %v35 = vcombine.high %v29, %v29
  %v36 = vcombine.high %v30, %v30
  %v41 = vcombine.low %v31, %v31
  %v42 = vcombine.low %v32, %v32
  %vm45 = vcmask 1043456
  %v46 = vsel %vm45, %v29, %v41
  %v47 = vsel %vm45, %v35, %v31
  %v48 = vsel %vm45, %v30, %v42
  %v49 = vsel %vm45, %v36, %v32
  %v50 = vld [vmem:[%s3] sm:$0xff]
  %52 = vset.pattern.permute.xlu0 0
  %53 = vperm.xlu0 %52, %v50
  %v54 = vpop.permute.xlu0 %53
  %v56 = vmul.f32 %v46, %v54
  %v57 = vmul.f32 %v47, %v54
  %v58 = vmul.f32 %v48, %v54
  %v59 = vmul.f32 %v49, %v54
  %v60 = vld [vmem:[%s4] sm:$0xff]
  %62 = vset.pattern.permute.xlu0 0
  %63 = vperm.xlu0 %62, %v60
  %v64 = vpop.permute.xlu0 %63
  %v66 = vadd.f32 %v56, %v64
  %v67 = vadd.f32 %v57, %v64
  %v68 = vadd.f32 %v58, %v64
  %v69 = vadd.f32 %v59, %v64
  %vm70 = vcmp.gt.f32.partialorder %v66, 0.0
  %vm71 = vcmp.gt.f32.partialorder %v67, 0.0
  %vm72 = vcmp.gt.f32.partialorder %v68, 0.0
  %vm73 = vcmp.gt.f32.partialorder %v69, 0.0
  %v74 = vmul.f32 %v66, 0.2
  %v75 = vmul.f32 %v67, 0.2
  %v76 = vmul.f32 %v68, 0.2
  %v77 = vmul.f32 %v69, 0.2
  %v78 = vsel %vm70, %v66, %v74
  %v79 = vsel %vm71, %v67, %v75
  %v80 = vsel %vm72, %v68, %v76
  %v81 = vsel %vm73, %v69, %v77
  %v82 = vld [vmem:[%s2] sm:$0xff]
  %v83 = vld [vmem:[%s2 + $0x8] sm:$0xff]
  %v84 = vld [vmem:[%s2 + $0x10] sm:$0xff]
  %v85 = vld [vmem:[%s2 + $0x18] sm:$0xff]
  %v86 = vld [vmem:[%s2 + $0x20] sm:$0x1]
  %v87 = vld [vmem:[%s2 + $0x28] sm:$0x1]
  %v88 = vld [vmem:[%s2 + $0x30] sm:$0x1]
  %v89 = vld [vmem:[%s2 + $0x38] sm:$0x1]
  %91 = vrot.lane.b32.xlu0 %v81, 17
  %v92 = vpop.permute.xlu0 %91
  %97 = vrot.lane.b32.xlu0 %v78, 17
  %v98 = vpop.permute.xlu0 %97
  %99 = vrot.lane.b32.xlu0 %v79, 17
  %v100 = vpop.permute.xlu0 %99
  %101 = vrot.lane.b32.xlu0 %v80, 17
  %v102 = vpop.permute.xlu0 %101
  %vm103 = vcmask 138240
  %v104 = vsel %vm103, %v98, %v100
  %v105 = vsel %vm103, %v100, %v102
  %v106 = vsel %vm103, %v102, %v92
  %v111 = vsel %vm103, %v92, %v98
  %v112 = vlaneseq
  %v113 = vshrl.u32 %v112, 7
  %v114 = vsub.s32 0, %v113
  %v115 = vrot.slane %v82, %v114
  %v116 = vlaneseq
  %v117 = vshrl.u32 %v116, 7
  %v118 = vsub.s32 0, %v117
  %v119 = vrot.slane %v83, %v118
  %v120 = vlaneseq
  %v121 = vshrl.u32 %v120, 7
  %v122 = vsub.s32 0, %v121
  %v123 = vrot.slane %v84, %v122
  %v124 = vlaneseq
  %v125 = vshrl.u32 %v124, 7
  %v126 = vsub.s32 0, %v125
  %v127 = vrot.slane %v85, %v126
  %v128 = vmul.f32 %v111, %v115
  %v129 = vmul.f32 %v104, %v119
  %v130 = vmul.f32 %v105, %v123
  %v131 = vmul.f32 %v106, %v127
  %132 = vrot.lane.b32.xlu0 %v81, 16
  %v133 = vpop.permute.xlu0 %132
  %135 = vrot.lane.b32.xlu0 %v78, 16
  %v136 = vpop.permute.xlu0 %135
  %137 = vrot.lane.b32.xlu0 %v79, 16
  %v138 = vpop.permute.xlu0 %137
  %139 = vrot.lane.b32.xlu0 %v80, 16
  %v140 = vpop.permute.xlu0 %139
  %vm141 = vcmask 130048
  %v142 = vsel %vm141, %v136, %v138
  %v143 = vsel %vm141, %v138, %v140
  %v144 = vsel %vm141, %v140, %v133
  %v149 = vsel %vm141, %v133, %v136
  %v150 = vlaneseq
  %v151 = vshrl.u32 %v150, 7
  %v152 = vsub.s32 1, %v151
  %v153 = vrot.slane %v82, %v152
  %v154 = vlaneseq
  %v155 = vshrl.u32 %v154, 7
  %v156 = vsub.s32 1, %v155
  %v157 = vrot.slane %v83, %v156
  %v158 = vlaneseq
  %v159 = vshrl.u32 %v158, 7
  %v160 = vsub.s32 1, %v159
  %v161 = vrot.slane %v84, %v160
  %v162 = vlaneseq
  %v163 = vshrl.u32 %v162, 7
  %v164 = vsub.s32 1, %v163
  %v165 = vrot.slane %v85, %v164
  %v166 = vmul.f32 %v149, %v153
  %v167 = vmul.f32 %v142, %v157
  %v168 = vmul.f32 %v143, %v161
  %v169 = vmul.f32 %v144, %v165
  %170 = vrot.lane.b32.xlu0 %v81, 15
  %v171 = vpop.permute.xlu0 %170
  %173 = vrot.lane.b32.xlu0 %v78, 15
  %v174 = vpop.permute.xlu0 %173
  %175 = vrot.lane.b32.xlu0 %v79, 15
  %v176 = vpop.permute.xlu0 %175
  %177 = vrot.lane.b32.xlu0 %v80, 15
  %v178 = vpop.permute.xlu0 %177
  %vm179 = vcmask 121856
  %v180 = vsel %vm179, %v174, %v176
  %v181 = vsel %vm179, %v176, %v178
  %v182 = vsel %vm179, %v178, %v171
  %v187 = vsel %vm179, %v171, %v174
  %v188 = vlaneseq
  %v189 = vshrl.u32 %v188, 7
  %v190 = vsub.s32 2, %v189
  %v191 = vrot.slane %v82, %v190
  %v192 = vlaneseq
  %v193 = vshrl.u32 %v192, 7
  %v194 = vsub.s32 2, %v193
  %v195 = vrot.slane %v83, %v194
  %v196 = vlaneseq
  %v197 = vshrl.u32 %v196, 7
  %v198 = vsub.s32 2, %v197
  %v199 = vrot.slane %v84, %v198
  %v200 = vlaneseq
  %v201 = vshrl.u32 %v200, 7
  %v202 = vsub.s32 2, %v201
  %v203 = vrot.slane %v85, %v202
  %v204 = vmul.f32 %v187, %v191
  %v205 = vmul.f32 %v180, %v195
  %v206 = vmul.f32 %v181, %v199
  %v207 = vmul.f32 %v182, %v203
  %208 = vrot.lane.b32.xlu0 %v81, 1
  %v209 = vpop.permute.xlu0 %208
  %211 = vrot.lane.b32.xlu0 %v78, 1
  %v212 = vpop.permute.xlu0 %211
  %213 = vrot.lane.b32.xlu0 %v79, 1
  %v214 = vpop.permute.xlu0 %213
  %215 = vrot.lane.b32.xlu0 %v80, 1
  %v216 = vpop.permute.xlu0 %215
  %vm217 = vcmask 7168
  %v218 = vsel %vm217, %v212, %v214
  %v219 = vsel %vm217, %v214, %v216
  %v220 = vsel %vm217, %v216, %v209
  %v225 = vsel %vm217, %v209, %v212
  %v226 = vlaneseq
  %v227 = vshrl.u32 %v226, 7
  %v228 = vsub.s32 3, %v227
  %v229 = vrot.slane %v82, %v228
  %v230 = vlaneseq
  %v231 = vshrl.u32 %v230, 7
  %v232 = vsub.s32 3, %v231
  %v233 = vrot.slane %v83, %v232
  %v234 = vlaneseq
  %v235 = vshrl.u32 %v234, 7
  %v236 = vsub.s32 3, %v235
  %v237 = vrot.slane %v84, %v236
  %v238 = vlaneseq
  %v239 = vshrl.u32 %v238, 7
  %v240 = vsub.s32 3, %v239
  %v241 = vrot.slane %v85, %v240
  %v242 = vmul.f32 %v225, %v229
  %v243 = vmul.f32 %v218, %v233
  %v244 = vmul.f32 %v219, %v237
  %v245 = vmul.f32 %v220, %v241
  %246 = vrot.lane.b32.xlu0 %v78, 127
  %v247 = vpop.permute.xlu0 %246
  %248 = vrot.lane.b32.xlu0 %v79, 127
  %v249 = vpop.permute.xlu0 %248
  %250 = vrot.lane.b32.xlu0 %v80, 127
  %v251 = vpop.permute.xlu0 %250
  %252 = vrot.lane.b32.xlu0 %v81, 127
  %v253 = vpop.permute.xlu0 %252
  %vm254 = vcmask 1039360
  %v255 = vsel %vm254, %v247, %v249
  %v256 = vsel %vm254, %v249, %v251
  %v257 = vsel %vm254, %v251, %v253
  %v263 = vsel %vm254, %v253, %v247
  %v264 = vlaneseq
  %v265 = vshrl.u32 %v264, 7
  %v266 = vsub.s32 5, %v265
  %v267 = vrot.slane %v82, %v266
  %v268 = vlaneseq
  %v269 = vshrl.u32 %v268, 7
  %v270 = vsub.s32 5, %v269
  %v271 = vrot.slane %v83, %v270
  %v272 = vlaneseq
  %v273 = vshrl.u32 %v272, 7
  %v274 = vsub.s32 5, %v273
  %v275 = vrot.slane %v84, %v274
  %v276 = vlaneseq
  %v277 = vshrl.u32 %v276, 7
  %v278 = vsub.s32 5, %v277
  %v279 = vrot.slane %v85, %v278
  %v280 = vmul.f32 %v255, %v267
  %v281 = vmul.f32 %v256, %v271
  %v282 = vmul.f32 %v257, %v275
  %v283 = vmul.f32 %v263, %v279
  %284 = vrot.lane.b32.xlu0 %v78, 113
  %v285 = vpop.permute.xlu0 %284
  %286 = vrot.lane.b32.xlu0 %v79, 113
  %v287 = vpop.permute.xlu0 %286
  %288 = vrot.lane.b32.xlu0 %v80, 113
  %v289 = vpop.permute.xlu0 %288
  %290 = vrot.lane.b32.xlu0 %v81, 113
  %v291 = vpop.permute.xlu0 %290
  %vm292 = vcmask 924672
  %v293 = vsel %vm292, %v285, %v287
  %v294 = vsel %vm292, %v287, %v289
  %v295 = vsel %vm292, %v289, %v291
  %v301 = vsel %vm292, %v291, %v285
  %v302 = vlaneseq
  %v303 = vshrl.u32 %v302, 7
  %v304 = vsub.s32 6, %v303
  %v305 = vrot.slane %v82, %v304
  %v306 = vlaneseq
  %v307 = vshrl.u32 %v306, 7
  %v308 = vsub.s32 6, %v307
  %v309 = vrot.slane %v83, %v308
  %v310 = vlaneseq
  %v311 = vshrl.u32 %v310, 7
  %v312 = vsub.s32 6, %v311
  %v313 = vrot.slane %v84, %v312
  %v314 = vlaneseq
  %v315 = vshrl.u32 %v314, 7
  %v316 = vsub.s32 6, %v315
  %v317 = vrot.slane %v85, %v316
  %v318 = vmul.f32 %v293, %v305
  %v319 = vmul.f32 %v294, %v309
  %v320 = vmul.f32 %v295, %v313
  %v321 = vmul.f32 %v301, %v317
  %322 = vrot.lane.b32.xlu0 %v78, 112
  %v323 = vpop.permute.xlu0 %322
  %324 = vrot.lane.b32.xlu0 %v79, 112
  %v325 = vpop.permute.xlu0 %324
  %326 = vrot.lane.b32.xlu0 %v80, 112
  %v327 = vpop.permute.xlu0 %326
  %328 = vrot.lane.b32.xlu0 %v81, 112
  %v329 = vpop.permute.xlu0 %328
  %vm330 = vcmask 916480
  %v331 = vsel %vm330, %v323, %v325
  %v332 = vsel %vm330, %v325, %v327
  %v333 = vsel %vm330, %v327, %v329
  %v339 = vsel %vm330, %v329, %v323
  %v340 = vlaneseq
  %v341 = vshrl.u32 %v340, 7
  %v342 = vsub.s32 7, %v341
  %v343 = vrot.slane %v82, %v342
  %v344 = vlaneseq
  %v345 = vshrl.u32 %v344, 7
  %v346 = vsub.s32 7, %v345
  %v347 = vrot.slane %v83, %v346
  %v348 = vlaneseq
  %v349 = vshrl.u32 %v348, 7
  %v350 = vsub.s32 7, %v349
  %v351 = vrot.slane %v84, %v350
  %v352 = vlaneseq
  %v353 = vshrl.u32 %v352, 7
  %v354 = vsub.s32 7, %v353
  %v355 = vrot.slane %v85, %v354
  %v356 = vmul.f32 %v331, %v343
  %v357 = vmul.f32 %v332, %v347
  %v358 = vmul.f32 %v333, %v351
  %v359 = vmul.f32 %v339, %v355
  %360 = vrot.lane.b32.xlu0 %v78, 111
  %v361 = vpop.permute.xlu0 %360
  %362 = vrot.lane.b32.xlu0 %v79, 111
  %v363 = vpop.permute.xlu0 %362
  %364 = vrot.lane.b32.xlu0 %v80, 111
  %v365 = vpop.permute.xlu0 %364
  %366 = vrot.lane.b32.xlu0 %v81, 111
  %v367 = vpop.permute.xlu0 %366
  %vm368 = vcmask 908288
  %v369 = vsel %vm368, %v361, %v363
  %v370 = vsel %vm368, %v363, %v365
  %v371 = vsel %vm368, %v365, %v367
  %v377 = vsel %vm368, %v367, %v361
  %v378 = vlaneseq
  %v379 = vshrl.u32 %v378, 7
  %v380 = vsub.s32 0, %v379
  %v381 = vrot.slane %v86, %v380
  %v382 = vlaneseq
  %v383 = vshrl.u32 %v382, 7
  %v384 = vsub.s32 0, %v383
  %v385 = vrot.slane %v87, %v384
  %v386 = vlaneseq
  %v387 = vshrl.u32 %v386, 7
  %v388 = vsub.s32 0, %v387
  %v389 = vrot.slane %v88, %v388
  %v390 = vlaneseq
  %v391 = vshrl.u32 %v390, 7
  %v392 = vsub.s32 0, %v391
  %v393 = vrot.slane %v89, %v392
  %v394 = vmul.f32 %v369, %v381
  %v395 = vmul.f32 %v370, %v385
  %v396 = vmul.f32 %v371, %v389
  %v397 = vmul.f32 %v377, %v393
  %v398 = vld [vmem:[%s5] sm:$0xff]
  %v399 = vld [vmem:[%s6] sm:$0xff]
  %401 = vset.pattern.permute.xlu0 0
  %402 = vperm.xlu0 %401, %v399
  %v403 = vpop.permute.xlu0 %402
  %vm405 = vcmask 588800
  %v407 = vsel %vm405, %v398, 0
  %409 = vmatprep.subr.mxu0 %v129
  %410 = vmatpush1.msra.mxu0 %v128
  %411 = vmatprep.subr.mxu0 %v167
  %412 = vmatpush1.msra.mxu0 %v166
  %413 = vmatprep.subr.mxu0 %v205
  %414 = vmatpush1.msra.mxu0 %v204
  %415 = vmatprep.subr.mxu0 %v243
  %416 = vmatpush1.msra.mxu0 %v242
  %417 = vmatprep.subr.mxu0 %v79
  %418 = vmatpush1.msra.mxu0 %v78
  %419 = vmatprep.subr.mxu0 %v281
  %420 = vmatpush1.msra.mxu0 %v280
  %421 = vmatprep.subr.mxu0 %v319
  %422 = vmatpush1.msra.mxu0 %v318
  %423 = vmatprep.subr.mxu0 %v357
  %424 = vmatpush1.msra.mxu0 %v356
  %425 = vmatprep.subr.mxu0 %v395
  %426 = vmatpush1.msra.mxu0 %v394
  %427 = vmatprep.subr.mxu0 0.0
  %428 = vmatpush1.msra.mxu0 0.0
  %429 = vmatprep.subr.mxu0 0.0
  %430 = vmatpush1.msra.mxu0 0.0
  %431 = vmatprep.subr.mxu0 0.0
  %432 = vmatpush1.msra.mxu0 0.0
  %433 = vmatprep.subr.mxu0 0.0
  %434 = vmatpush1.msra.mxu0 0.0
  %435 = vmatprep.subr.mxu0 0.0
  %436 = vmatpush1.msra.mxu0 0.0
  %437 = vmatprep.subr.mxu0 0.0
  %438 = vmatpush1.msra.mxu0 0.0
  %439 = vmatprep.subr.mxu0 0.0
  %440 = vmatpush1.msra.mxu0 0.0
  %441 = vmatprep.subr.mxu0 0.0
  %442 = vmatpush1.msra.mxu0 0.0
  %443 = vmatprep.subr.mxu0 0.0
  %444 = vmatpush1.msra.mxu0 0.0
  %445 = vmatprep.subr.mxu0 0.0
  %446 = vmatpush1.msra.mxu0 0.0
  %447 = vmatprep.subr.mxu0 0.0
  %448 = vmatpush1.msra.mxu0 0.0
  %449 = vmatprep.subr.mxu0 0.0
  %450 = vmatpush1.msra.mxu0 0.0
  %451 = vmatprep.subr.mxu0 0.0
  %452 = vmatpush1.msra.mxu0 0.0
  %453 = vmatprep.subr.mxu0 0.0
  %454 = vmatpush1.msra.mxu0 0.0
  %455 = vmatprep.subr.mxu0 0.0
  %456 = vmatpush1.msra.mxu0 0.0
  %457 = vmatprep.subr.mxu0 0.0
  %458 = vmatpush1.msra.mxu0 0.0
  %459 = vmatprep.subr.mxu0 0.0
  %460 = vmatpush1.msra.mxu0 0.0
  %461 = vmatprep.subr.mxu0 0.0
  %462 = vmatpush1.msra.mxu0 0.0
  %463 = vmatprep.subr.mxu0 0.0
  %464 = vmatpush1.msra.mxu0 0.0
  %465 = vmatprep.subr.mxu0 0.0
  %466 = vmatpush1.msra.mxu0 0.0
  %467 = vmatprep.subr.mxu0 0.0
  %468 = vmatpush1.msra.mxu0 0.0
  %469 = vmatprep.subr.mxu0 0.0
  %470 = vmatpush1.msra.mxu0 0.0
  %471 = vmatprep.subr.mxu0 0.0
  %472 = vmatpush1.msra.mxu0 0.0
  %473 = vmatprep.mubr.f32.mxu0 0.0
  %474 = vmatmul.mubr.f32.gmra.mrb[0].mxu0 %v407
  %v475 = vpop.f32.mrb[0].mxu0
  %v476 = vadd.f32 %v403, %v475
  %v477 = vpop.f32.mrb[0].mxu0
  %v478 = vadd.f32 %v403, %v477
  %479 = vdwg.mxu0
  %480 = vmatprep.subr.mxu0 %v131
  %481 = vmatpush1.msra.mxu0 %v130
  %482 = vmatprep.subr.mxu0 %v169
  %483 = vmatpush1.msra.mxu0 %v168
  %484 = vmatprep.subr.mxu0 %v207
  %485 = vmatpush1.msra.mxu0 %v206
  %486 = vmatprep.subr.mxu0 %v245
  %487 = vmatpush1.msra.mxu0 %v244
  %488 = vmatprep.subr.mxu0 %v81
  %489 = vmatpush1.msra.mxu0 %v80
  %490 = vmatprep.subr.mxu0 %v283
  %491 = vmatpush1.msra.mxu0 %v282
  %492 = vmatprep.subr.mxu0 %v321
  %493 = vmatpush1.msra.mxu0 %v320
  %494 = vmatprep.subr.mxu0 %v359
  %495 = vmatpush1.msra.mxu0 %v358
  %496 = vmatprep.subr.mxu0 %v397
  %497 = vmatpush1.msra.mxu0 %v396
  %498 = vmatprep.subr.mxu0 0.0
  %499 = vmatpush1.msra.mxu0 0.0
  %500 = vmatprep.subr.mxu0 0.0
  %501 = vmatpush1.msra.mxu0 0.0
  %502 = vmatprep.subr.mxu0 0.0
  %503 = vmatpush1.msra.mxu0 0.0
  %504 = vmatprep.subr.mxu0 0.0
  %505 = vmatpush1.msra.mxu0 0.0
  %506 = vmatprep.subr.mxu0 0.0
  %507 = vmatpush1.msra.mxu0 0.0
  %508 = vmatprep.subr.mxu0 0.0
  %509 = vmatpush1.msra.mxu0 0.0
  %510 = vmatprep.subr.mxu0 0.0
  %511 = vmatpush1.msra.mxu0 0.0
  %512 = vmatprep.subr.mxu0 0.0
  %513 = vmatpush1.msra.mxu0 0.0
  %514 = vmatprep.subr.mxu0 0.0
  %515 = vmatpush1.msra.mxu0 0.0
  %516 = vmatprep.subr.mxu0 0.0
  %517 = vmatpush1.msra.mxu0 0.0
  %518 = vmatprep.subr.mxu0 0.0
  %519 = vmatpush1.msra.mxu0 0.0
  %520 = vmatprep.subr.mxu0 0.0
  %521 = vmatpush1.msra.mxu0 0.0
  %522 = vmatprep.subr.mxu0 0.0
  %523 = vmatpush1.msra.mxu0 0.0
  %524 = vmatprep.subr.mxu0 0.0
  %525 = vmatpush1.msra.mxu0 0.0
  %526 = vmatprep.subr.mxu0 0.0
  %527 = vmatpush1.msra.mxu0 0.0
  %528 = vmatprep.subr.mxu0 0.0
  %529 = vmatpush1.msra.mxu0 0.0
  %530 = vmatprep.subr.mxu0 0.0
  %531 = vmatpush1.msra.mxu0 0.0
  %532 = vmatprep.subr.mxu0 0.0
  %533 = vmatpush1.msra.mxu0 0.0
  %534 = vmatprep.subr.mxu0 0.0
  %535 = vmatpush1.msra.mxu0 0.0
  %536 = vmatprep.subr.mxu0 0.0
  %537 = vmatpush1.msra.mxu0 0.0
  %538 = vmatprep.subr.mxu0 0.0
  %539 = vmatpush1.msra.mxu0 0.0
  %540 = vmatprep.subr.mxu0 0.0
  %541 = vmatpush1.msra.mxu0 0.0
  %542 = vmatprep.subr.mxu0 0.0
  %543 = vmatpush1.msra.mxu0 0.0
  %544 = vmatprep.mubr.f32.mxu0 0.0
  %545 = vmatmul.mubr.f32.gmra.mrb[0].mxu0 %v407
  %v546 = vpop.f32.mrb[0].mxu0
  %v547 = vadd.f32 %v403, %v546
  %v548 = vpop.f32.mrb[0].mxu0
  %v549 = vadd.f32 %v403, %v548
  %550 = vdwg.mxu0
  %v551 = vpack.c.bf16 %v476, %v476
  %v552 = vpack.c.bf16 %v478, %v478
  %v553 = vpack.c.bf16 %v547, %v547
  %v554 = vpack.c.bf16 %v549, %v549
  %v559 = vunpack.c.l.b16 %v551
  %v560 = vunpack.c.l.b16 %v552
  %v561 = vunpack.c.l.b16 %v553
  %v562 = vunpack.c.l.b16 %v554
  %v563 = vpack.c.b16 %v560, %v559
  %v564 = vpack.c.b16 %v562, %v561
  %567 = vst [vmem:[%s7] sm:$0xff] %v563
  %568 = vst [vmem:[%s7 + $0x8] sm:$0xff] %v564
  %v569 = vunpack.c.l.bf16 %v551
  %v570 = vunpack.c.l.bf16 %v552
  %v571 = vunpack.c.l.bf16 %v553
  %v572 = vunpack.c.l.bf16 %v554
  %v573 = vadd.f32 %v569, %v570
  %v574 = vadd.f32 %v573, %v571
  %v575 = vadd.f32 %v574, %v572
  %576 = vadd.xlane.f32.xlu0 %v575
  %v577 = vpop.xlane.xlu0 %576
  %v578 = vmul.f32 %v569, %v569
  %v579 = vmul.f32 %v570, %v570
  %v580 = vmul.f32 %v571, %v571
  %v581 = vmul.f32 %v572, %v572
  %v582 = vadd.f32 %v578, %v579
  %v583 = vadd.f32 %v582, %v580
  %v584 = vadd.f32 %v583, %v581
  %585 = vadd.xlane.f32.xlu0 %v584
  %v586 = vpop.xlane.xlu0 %585
  %v587 = vsel %vm217, %v577, %v586
  %vm588 = vcmask 15360
  %589 = vst.msk [vmem:[%s8] sm:$0xff] %vm588, %v587
  // Predicated region
  $region30: #{_forward_impl.4} parent=0 // pred_check
    _
  $region31: #{_forward_impl.4} parent=0 // pred_check_branch
    %591 = sbr.rel (0) target = $region33
  $region32: #{_forward_impl.4} parent=0 // pred_region
    _
  $region33: #{_forward_impl.4} parent=0 // pred_fallthru
    _
  // Predicated region
  $region34: #{_forward_impl.4} parent=0 // pred_check
    _
  $region35: #{_forward_impl.4} parent=0 // pred_check_branch
    %593 = sbr.rel (0) target = $region37
  $region36: #{_forward_impl.4} parent=0 // pred_region
    _
  $region37: #{_forward_impl.4} parent=0 // pred_fallthru
    _
  // Predicated region
  $region38: #{_forward_impl.4} parent=0 // pred_check
    _
  $region39: #{_forward_impl.4} parent=0 // pred_check_branch
    %595 = sbr.rel (0) target = $region41
  $region40: #{_forward_impl.4} parent=0 // pred_region
    _
  $region41: #{_forward_impl.4} parent=0 // pred_fallthru
    _
  // Predicated region
  $region42: #{_forward_impl.4} parent=0 // pred_check
    _
  $region43: #{_forward_impl.4} parent=0 // pred_check_branch
    %597 = sbr.rel (0) target = $region45
  $region44: #{_forward_impl.4} parent=0 // pred_region
    _
  $region45: #{_forward_impl.4} parent=0 // pred_fallthru
    _

// kernel: _forward_impl.3
$region0: #{_forward_impl.3}
  #allocation0 [shape = 'u32[]', space=smem, size = 0x4, offset = 0x4, fixed_abs, tag = 'smem constant byte address 0x4 - core index']
  #allocation1 [shape = 'u32[144,128]{1,0:T(1,128)}', space=vmem, size = 0x12000, scoped, tag = 'internal scratch']
  %s0 = inlined_call_operand.vmem [shape: f32[8,512], index: 0, kind: input, shape index: {}]
  %s1 = inlined_call_operand.vmem [shape: f32[4,512], index: 1, kind: input, shape index: {}]
  %s2 = inlined_call_operand.vmem [shape: f32[9,512], index: 2, kind: input, shape index: {}]
  %s3 = inlined_call_operand.vmem [shape: f32[4,72], index: 3, kind: input, shape index: {}]
  %s4 = inlined_call_operand.vmem [shape: f32[4,1], index: 4, kind: input, shape index: {}]
  %s5 = inlined_call_operand.vmem [shape: bf16[4,512], index: 5, kind: output, shape index: {0}]
  %s6 = inlined_call_operand.vmem [shape: f32[8,2], index: 6, kind: output, shape index: {1}]
  %7 = xla_tuple %s5, %s6
  %s8 = sld [smem:[#allocation0]]
  $region38: #{_forward_impl.3} parent=0
    _
  %s10 = ssub.s32 1, %s8
  %s11 = scalar_select 0, %s10, %s8
  // Predicated region
  $region2: #{_forward_impl.3} parent=0 // pred_check
    _
  $region3: #{_forward_impl.3} parent=0 // pred_check_branch
    %13 = sbr.rel (0) target = $region5
  $region4: #{_forward_impl.3} parent=0 // pred_region
    _
  $region5: #{_forward_impl.3} parent=0 // pred_fallthru
    _
  // Predicated region
  $region6: #{_forward_impl.3} parent=0 // pred_check
    _
  $region7: #{_forward_impl.3} parent=0 // pred_check_branch
    %15 = sbr.rel (0) target = $region9
  $region8: #{_forward_impl.3} parent=0 // pred_region
    _
  $region9: #{_forward_impl.3} parent=0 // pred_fallthru
    _
  // Predicated region
  $region10: #{_forward_impl.3} parent=0 // pred_check
    _
  $region11: #{_forward_impl.3} parent=0 // pred_check_branch
    %17 = sbr.rel (0) target = $region13
  $region12: #{_forward_impl.3} parent=0 // pred_region
    _
  $region13: #{_forward_impl.3} parent=0 // pred_fallthru
    _
  // Predicated region
  $region14: #{_forward_impl.3} parent=0 // pred_check
    _
  $region15: #{_forward_impl.3} parent=0 // pred_check_branch
    %19 = sbr.rel (0) target = $region17
  $region16: #{_forward_impl.3} parent=0 // pred_region
    _
  $region17: #{_forward_impl.3} parent=0 // pred_fallthru
    _
  // Predicated region
  $region18: #{_forward_impl.3} parent=0 // pred_check
    _
  $region19: #{_forward_impl.3} parent=0 // pred_check_branch
    %21 = sbr.rel (0) target = $region21
  $region20: #{_forward_impl.3} parent=0 // pred_region
    _
  $region21: #{_forward_impl.3} parent=0 // pred_fallthru
    _
  %v22 = vld [vmem:[%s0] sm:$0xff]
  %v23 = vld [vmem:[%s0 + $0x8] sm:$0xff]
  %v24 = vld [vmem:[%s0 + $0x10] sm:$0xff]
  %v25 = vld [vmem:[%s0 + $0x18] sm:$0xff]
  %v26 = vld [vmem:[%s2] sm:$0xff]
  %v27 = vld [vmem:[%s2 + $0x8] sm:$0xff]
  %v28 = vld [vmem:[%s2 + $0x10] sm:$0xff]
  %v29 = vld [vmem:[%s2 + $0x18] sm:$0xff]
  %v30 = vld [vmem:[%s2 + $0x20] sm:$0x1]
  %v31 = vld [vmem:[%s2 + $0x28] sm:$0x1]
  %v32 = vld [vmem:[%s2 + $0x30] sm:$0x1]
  %v33 = vld [vmem:[%s2 + $0x38] sm:$0x1]
  %35 = vrot.lane.b32.xlu0 %v25, 17
  %v36 = vpop.permute.xlu0 %35
  %41 = vrot.lane.b32.xlu0 %v22, 17
  %v42 = vpop.permute.xlu0 %41
  %43 = vrot.lane.b32.xlu0 %v23, 17
  %v44 = vpop.permute.xlu0 %43
  %45 = vrot.lane.b32.xlu0 %v24, 17
  %v46 = vpop.permute.xlu0 %45
  %vm47 = vcmask 138240
  %v48 = vsel %vm47, %v42, %v44
  %v49 = vsel %vm47, %v44, %v46
  %v50 = vsel %vm47, %v46, %v36
  %v55 = vsel %vm47, %v36, %v42
  %v56 = vlaneseq
  %v57 = vshrl.u32 %v56, 7
  %v58 = vsub.s32 0, %v57
  %v59 = vrot.slane %v26, %v58
  %v60 = vlaneseq
  %v61 = vshrl.u32 %v60, 7
  %v62 = vsub.s32 0, %v61
  %v63 = vrot.slane %v27, %v62
  %v64 = vlaneseq
  %v65 = vshrl.u32 %v64, 7
  %v66 = vsub.s32 0, %v65
  %v67 = vrot.slane %v28, %v66
  %v68 = vlaneseq
  %v69 = vshrl.u32 %v68, 7
  %v70 = vsub.s32 0, %v69
  %v71 = vrot.slane %v29, %v70
  %v72 = vmul.f32 %v55, %v59
  %v73 = vmul.f32 %v48, %v63
  %v74 = vmul.f32 %v49, %v67
  %v75 = vmul.f32 %v50, %v71
  %76 = vrot.lane.b32.xlu0 %v25, 16
  %v77 = vpop.permute.xlu0 %76
  %79 = vrot.lane.b32.xlu0 %v22, 16
  %v80 = vpop.permute.xlu0 %79
  %81 = vrot.lane.b32.xlu0 %v23, 16
  %v82 = vpop.permute.xlu0 %81
  %83 = vrot.lane.b32.xlu0 %v24, 16
  %v84 = vpop.permute.xlu0 %83
  %vm85 = vcmask 130048
  %v86 = vsel %vm85, %v80, %v82
  %v87 = vsel %vm85, %v82, %v84
  %v88 = vsel %vm85, %v84, %v77
  %v93 = vsel %vm85, %v77, %v80
  %v94 = vlaneseq
  %v95 = vshrl.u32 %v94, 7
  %v96 = vsub.s32 1, %v95
  %v97 = vrot.slane %v26, %v96
  %v98 = vlaneseq
  %v99 = vshrl.u32 %v98, 7
  %v100 = vsub.s32 1, %v99
  %v101 = vrot.slane %v27, %v100
  %v102 = vlaneseq
  %v103 = vshrl.u32 %v102, 7
  %v104 = vsub.s32 1, %v103
  %v105 = vrot.slane %v28, %v104
  %v106 = vlaneseq
  %v107 = vshrl.u32 %v106, 7
  %v108 = vsub.s32 1, %v107
  %v109 = vrot.slane %v29, %v108
  %v110 = vmul.f32 %v93, %v97
  %v111 = vmul.f32 %v86, %v101
  %v112 = vmul.f32 %v87, %v105
  %v113 = vmul.f32 %v88, %v109
  %114 = vrot.lane.b32.xlu0 %v25, 15
  %v115 = vpop.permute.xlu0 %114
  %117 = vrot.lane.b32.xlu0 %v22, 15
  %v118 = vpop.permute.xlu0 %117
  %119 = vrot.lane.b32.xlu0 %v23, 15
  %v120 = vpop.permute.xlu0 %119
  %121 = vrot.lane.b32.xlu0 %v24, 15
  %v122 = vpop.permute.xlu0 %121
  %vm123 = vcmask 121856
  %v124 = vsel %vm123, %v118, %v120
  %v125 = vsel %vm123, %v120, %v122
  %v126 = vsel %vm123, %v122, %v115
  %v131 = vsel %vm123, %v115, %v118
  %v132 = vlaneseq
  %v133 = vshrl.u32 %v132, 7
  %v134 = vsub.s32 2, %v133
  %v135 = vrot.slane %v26, %v134
  %v136 = vlaneseq
  %v137 = vshrl.u32 %v136, 7
  %v138 = vsub.s32 2, %v137
  %v139 = vrot.slane %v27, %v138
  %v140 = vlaneseq
  %v141 = vshrl.u32 %v140, 7
  %v142 = vsub.s32 2, %v141
  %v143 = vrot.slane %v28, %v142
  %v144 = vlaneseq
  %v145 = vshrl.u32 %v144, 7
  %v146 = vsub.s32 2, %v145
  %v147 = vrot.slane %v29, %v146
  %v148 = vmul.f32 %v131, %v135
  %v149 = vmul.f32 %v124, %v139
  %v150 = vmul.f32 %v125, %v143
  %v151 = vmul.f32 %v126, %v147
  %152 = vrot.lane.b32.xlu0 %v25, 1
  %v153 = vpop.permute.xlu0 %152
  %155 = vrot.lane.b32.xlu0 %v22, 1
  %v156 = vpop.permute.xlu0 %155
  %157 = vrot.lane.b32.xlu0 %v23, 1
  %v158 = vpop.permute.xlu0 %157
  %159 = vrot.lane.b32.xlu0 %v24, 1
  %v160 = vpop.permute.xlu0 %159
  %vm161 = vcmask 7168
  %v162 = vsel %vm161, %v156, %v158
  %v163 = vsel %vm161, %v158, %v160
  %v164 = vsel %vm161, %v160, %v153
  %v169 = vsel %vm161, %v153, %v156
  %v170 = vlaneseq
  %v171 = vshrl.u32 %v170, 7
  %v172 = vsub.s32 3, %v171
  %v173 = vrot.slane %v26, %v172
  %v174 = vlaneseq
  %v175 = vshrl.u32 %v174, 7
  %v176 = vsub.s32 3, %v175
  %v177 = vrot.slane %v27, %v176
  %v178 = vlaneseq
  %v179 = vshrl.u32 %v178, 7
  %v180 = vsub.s32 3, %v179
  %v181 = vrot.slane %v28, %v180
  %v182 = vlaneseq
  %v183 = vshrl.u32 %v182, 7
  %v184 = vsub.s32 3, %v183
  %v185 = vrot.slane %v29, %v184
  %v186 = vmul.f32 %v169, %v173
  %v187 = vmul.f32 %v162, %v177
  %v188 = vmul.f32 %v163, %v181
  %v189 = vmul.f32 %v164, %v185
  %190 = vrot.lane.b32.xlu0 %v22, 127
  %v191 = vpop.permute.xlu0 %190
  %192 = vrot.lane.b32.xlu0 %v23, 127
  %v193 = vpop.permute.xlu0 %192
  %194 = vrot.lane.b32.xlu0 %v24, 127
  %v195 = vpop.permute.xlu0 %194
  %196 = vrot.lane.b32.xlu0 %v25, 127
  %v197 = vpop.permute.xlu0 %196
  %vm198 = vcmask 1039360
  %v199 = vsel %vm198, %v191, %v193
  %v200 = vsel %vm198, %v193, %v195
  %v201 = vsel %vm198, %v195, %v197
  %v207 = vsel %vm198, %v197, %v191
  %v208 = vlaneseq
  %v209 = vshrl.u32 %v208, 7
  %v210 = vsub.s32 5, %v209
  %v211 = vrot.slane %v26, %v210
  %v212 = vlaneseq
  %v213 = vshrl.u32 %v212, 7
  %v214 = vsub.s32 5, %v213
  %v215 = vrot.slane %v27, %v214
  %v216 = vlaneseq
  %v217 = vshrl.u32 %v216, 7
  %v218 = vsub.s32 5, %v217
  %v219 = vrot.slane %v28, %v218
  %v220 = vlaneseq
  %v221 = vshrl.u32 %v220, 7
  %v222 = vsub.s32 5, %v221
  %v223 = vrot.slane %v29, %v222
  %v224 = vmul.f32 %v199, %v211
  %v225 = vmul.f32 %v200, %v215
  %v226 = vmul.f32 %v201, %v219
  %v227 = vmul.f32 %v207, %v223
  %228 = vrot.lane.b32.xlu0 %v22, 113
  %v229 = vpop.permute.xlu0 %228
  %230 = vrot.lane.b32.xlu0 %v23, 113
  %v231 = vpop.permute.xlu0 %230
  %232 = vrot.lane.b32.xlu0 %v24, 113
  %v233 = vpop.permute.xlu0 %232
  %234 = vrot.lane.b32.xlu0 %v25, 113
  %v235 = vpop.permute.xlu0 %234
  %vm236 = vcmask 924672
  %v237 = vsel %vm236, %v229, %v231
  %v238 = vsel %vm236, %v231, %v233
  %v239 = vsel %vm236, %v233, %v235
  %v245 = vsel %vm236, %v235, %v229
  %v246 = vlaneseq
  %v247 = vshrl.u32 %v246, 7
  %v248 = vsub.s32 6, %v247
  %v249 = vrot.slane %v26, %v248
  %v250 = vlaneseq
  %v251 = vshrl.u32 %v250, 7
  %v252 = vsub.s32 6, %v251
  %v253 = vrot.slane %v27, %v252
  %v254 = vlaneseq
  %v255 = vshrl.u32 %v254, 7
  %v256 = vsub.s32 6, %v255
  %v257 = vrot.slane %v28, %v256
  %v258 = vlaneseq
  %v259 = vshrl.u32 %v258, 7
  %v260 = vsub.s32 6, %v259
  %v261 = vrot.slane %v29, %v260
  %v262 = vmul.f32 %v237, %v249
  %v263 = vmul.f32 %v238, %v253
  %v264 = vmul.f32 %v239, %v257
  %v265 = vmul.f32 %v245, %v261
  %266 = vrot.lane.b32.xlu0 %v22, 112
  %v267 = vpop.permute.xlu0 %266
  %268 = vrot.lane.b32.xlu0 %v23, 112
  %v269 = vpop.permute.xlu0 %268
  %270 = vrot.lane.b32.xlu0 %v24, 112
  %v271 = vpop.permute.xlu0 %270
  %272 = vrot.lane.b32.xlu0 %v25, 112
  %v273 = vpop.permute.xlu0 %272
  %vm274 = vcmask 916480
  %v275 = vsel %vm274, %v267, %v269
  %v276 = vsel %vm274, %v269, %v271
  %v277 = vsel %vm274, %v271, %v273
  %v283 = vsel %vm274, %v273, %v267
  %v284 = vlaneseq
  %v285 = vshrl.u32 %v284, 7
  %v286 = vsub.s32 7, %v285
  %v287 = vrot.slane %v26, %v286
  %v288 = vlaneseq
  %v289 = vshrl.u32 %v288, 7
  %v290 = vsub.s32 7, %v289
  %v291 = vrot.slane %v27, %v290
  %v292 = vlaneseq
  %v293 = vshrl.u32 %v292, 7
  %v294 = vsub.s32 7, %v293
  %v295 = vrot.slane %v28, %v294
  %v296 = vlaneseq
  %v297 = vshrl.u32 %v296, 7
  %v298 = vsub.s32 7, %v297
  %v299 = vrot.slane %v29, %v298
  %v300 = vmul.f32 %v275, %v287
  %v301 = vmul.f32 %v276, %v291
  %v302 = vmul.f32 %v277, %v295
  %v303 = vmul.f32 %v283, %v299
  %304 = vrot.lane.b32.xlu0 %v22, 111
  %v305 = vpop.permute.xlu0 %304
  %306 = vrot.lane.b32.xlu0 %v23, 111
  %v307 = vpop.permute.xlu0 %306
  %308 = vrot.lane.b32.xlu0 %v24, 111
  %v309 = vpop.permute.xlu0 %308
  %310 = vrot.lane.b32.xlu0 %v25, 111
  %v311 = vpop.permute.xlu0 %310
  %vm312 = vcmask 908288
  %v313 = vsel %vm312, %v305, %v307
  %v314 = vsel %vm312, %v307, %v309
  %v315 = vsel %vm312, %v309, %v311
  %v321 = vsel %vm312, %v311, %v305
  %v322 = vlaneseq
  %v323 = vshrl.u32 %v322, 7
  %v324 = vsub.s32 0, %v323
  %v325 = vrot.slane %v30, %v324
  %v326 = vlaneseq
  %v327 = vshrl.u32 %v326, 7
  %v328 = vsub.s32 0, %v327
  %v329 = vrot.slane %v31, %v328
  %v330 = vlaneseq
  %v331 = vshrl.u32 %v330, 7
  %v332 = vsub.s32 0, %v331
  %v333 = vrot.slane %v32, %v332
  %v334 = vlaneseq
  %v335 = vshrl.u32 %v334, 7
  %v336 = vsub.s32 0, %v335
  %v337 = vrot.slane %v33, %v336
  %v338 = vmul.f32 %v313, %v325
  %v339 = vmul.f32 %v314, %v329
  %v340 = vmul.f32 %v315, %v333
  %v341 = vmul.f32 %v321, %v337
  %v342 = vld [vmem:[%s3] sm:$0xf]
  %v343 = vld [vmem:[%s4] sm:$0xf]
  %345 = vset.pattern.permute.xlu0 0
  %346 = vperm.xlu0 %345, %v343
  %v347 = vpop.permute.xlu0 %346
  %vm349 = vcmask 588800
  %v351 = vsel %vm349, %v342, 0
  %353 = vmatprep.subr.mxu0 %v73
  %354 = vmatpush1.msra.mxu0 %v72
  %355 = vmatprep.subr.mxu0 %v111
  %356 = vmatpush1.msra.mxu0 %v110
  %357 = vmatprep.subr.mxu0 %v149
  %358 = vmatpush1.msra.mxu0 %v148
  %359 = vmatprep.subr.mxu0 %v187
  %360 = vmatpush1.msra.mxu0 %v186
  %361 = vmatprep.subr.mxu0 %v23
  %362 = vmatpush1.msra.mxu0 %v22
  %363 = vmatprep.subr.mxu0 %v225
  %364 = vmatpush1.msra.mxu0 %v224
  %365 = vmatprep.subr.mxu0 %v263
  %366 = vmatpush1.msra.mxu0 %v262
  %367 = vmatprep.subr.mxu0 %v301
  %368 = vmatpush1.msra.mxu0 %v300
  %369 = vmatprep.subr.mxu0 %v339
  %370 = vmatpush1.msra.mxu0 %v338
  %371 = vmatprep.subr.mxu0 0.0
  %372 = vmatpush1.msra.mxu0 0.0
  %373 = vmatprep.subr.mxu0 0.0
  %374 = vmatpush1.msra.mxu0 0.0
  %375 = vmatprep.subr.mxu0 0.0
  %376 = vmatpush1.msra.mxu0 0.0
  %377 = vmatprep.subr.mxu0 0.0
  %378 = vmatpush1.msra.mxu0 0.0
  %379 = vmatprep.subr.mxu0 0.0
  %380 = vmatpush1.msra.mxu0 0.0
  %381 = vmatprep.subr.mxu0 0.0
  %382 = vmatpush1.msra.mxu0 0.0
  %383 = vmatprep.subr.mxu0 0.0
  %384 = vmatpush1.msra.mxu0 0.0
  %385 = vmatprep.subr.mxu0 0.0
  %386 = vmatpush1.msra.mxu0 0.0
  %387 = vmatprep.subr.mxu0 0.0
  %388 = vmatpush1.msra.mxu0 0.0
  %389 = vmatprep.subr.mxu0 0.0
  %390 = vmatpush1.msra.mxu0 0.0
  %391 = vmatprep.subr.mxu0 0.0
  %392 = vmatpush1.msra.mxu0 0.0
  %393 = vmatprep.subr.mxu0 0.0
  %394 = vmatpush1.msra.mxu0 0.0
  %395 = vmatprep.subr.mxu0 0.0
  %396 = vmatpush1.msra.mxu0 0.0
  %397 = vmatprep.subr.mxu0 0.0
  %398 = vmatpush1.msra.mxu0 0.0
  %399 = vmatprep.subr.mxu0 0.0
  %400 = vmatpush1.msra.mxu0 0.0
  %401 = vmatprep.subr.mxu0 0.0
  %402 = vmatpush1.msra.mxu0 0.0
  %403 = vmatprep.subr.mxu0 0.0
  %404 = vmatpush1.msra.mxu0 0.0
  %405 = vmatprep.subr.mxu0 0.0
  %406 = vmatpush1.msra.mxu0 0.0
  %407 = vmatprep.subr.mxu0 0.0
  %408 = vmatpush1.msra.mxu0 0.0
  %409 = vmatprep.subr.mxu0 0.0
  %410 = vmatpush1.msra.mxu0 0.0
  %411 = vmatprep.subr.mxu0 0.0
  %412 = vmatpush1.msra.mxu0 0.0
  %413 = vmatprep.subr.mxu0 0.0
  %414 = vmatpush1.msra.mxu0 0.0
  %415 = vmatprep.subr.mxu0 0.0
  %416 = vmatpush1.msra.mxu0 0.0
  %417 = vmatprep.mubr.f32.mxu0 0.0
  %418 = vmatmul.mubr.f32.gmra.mrb[0].mxu0 %v351
  %v419 = vpop.f32.mrb[0].mxu0
  %v420 = vadd.f32 %v347, %v419
  %v421 = vpop.f32.mrb[0].mxu0
  %v422 = vadd.f32 %v347, %v421
  %423 = vdwg.mxu0
  %424 = vmatprep.subr.mxu0 %v75
  %425 = vmatpush1.msra.mxu0 %v74
  %426 = vmatprep.subr.mxu0 %v113
  %427 = vmatpush1.msra.mxu0 %v112
  %428 = vmatprep.subr.mxu0 %v151
  %429 = vmatpush1.msra.mxu0 %v150
  %430 = vmatprep.subr.mxu0 %v189
  %431 = vmatpush1.msra.mxu0 %v188
  %432 = vmatprep.subr.mxu0 %v25
  %433 = vmatpush1.msra.mxu0 %v24
  %434 = vmatprep.subr.mxu0 %v227
  %435 = vmatpush1.msra.mxu0 %v226
  %436 = vmatprep.subr.mxu0 %v265
  %437 = vmatpush1.msra.mxu0 %v264
  %438 = vmatprep.subr.mxu0 %v303
  %439 = vmatpush1.msra.mxu0 %v302
  %440 = vmatprep.subr.mxu0 %v341
  %441 = vmatpush1.msra.mxu0 %v340
  %442 = vmatprep.subr.mxu0 0.0
  %443 = vmatpush1.msra.mxu0 0.0
  %444 = vmatprep.subr.mxu0 0.0
  %445 = vmatpush1.msra.mxu0 0.0
  %446 = vmatprep.subr.mxu0 0.0
  %447 = vmatpush1.msra.mxu0 0.0
  %448 = vmatprep.subr.mxu0 0.0
  %449 = vmatpush1.msra.mxu0 0.0
  %450 = vmatprep.subr.mxu0 0.0
  %451 = vmatpush1.msra.mxu0 0.0
  %452 = vmatprep.subr.mxu0 0.0
  %453 = vmatpush1.msra.mxu0 0.0
  %454 = vmatprep.subr.mxu0 0.0
  %455 = vmatpush1.msra.mxu0 0.0
  %456 = vmatprep.subr.mxu0 0.0
  %457 = vmatpush1.msra.mxu0 0.0
  %458 = vmatprep.subr.mxu0 0.0
  %459 = vmatpush1.msra.mxu0 0.0
  %460 = vmatprep.subr.mxu0 0.0
  %461 = vmatpush1.msra.mxu0 0.0
  %462 = vmatprep.subr.mxu0 0.0
  %463 = vmatpush1.msra.mxu0 0.0
  %464 = vmatprep.subr.mxu0 0.0
  %465 = vmatpush1.msra.mxu0 0.0
  %466 = vmatprep.subr.mxu0 0.0
  %467 = vmatpush1.msra.mxu0 0.0
  %468 = vmatprep.subr.mxu0 0.0
  %469 = vmatpush1.msra.mxu0 0.0
  %470 = vmatprep.subr.mxu0 0.0
  %471 = vmatpush1.msra.mxu0 0.0
  %472 = vmatprep.subr.mxu0 0.0
  %473 = vmatpush1.msra.mxu0 0.0
  %474 = vmatprep.subr.mxu0 0.0
  %475 = vmatpush1.msra.mxu0 0.0
  %476 = vmatprep.subr.mxu0 0.0
  %477 = vmatpush1.msra.mxu0 0.0
  %478 = vmatprep.subr.mxu0 0.0
  %479 = vmatpush1.msra.mxu0 0.0
  %480 = vmatprep.subr.mxu0 0.0
  %481 = vmatpush1.msra.mxu0 0.0
  %482 = vmatprep.subr.mxu0 0.0
  %483 = vmatpush1.msra.mxu0 0.0
  %484 = vmatprep.subr.mxu0 0.0
  %485 = vmatpush1.msra.mxu0 0.0
  %486 = vmatprep.subr.mxu0 0.0
  %487 = vmatpush1.msra.mxu0 0.0
  %488 = vmatprep.mubr.f32.mxu0 0.0
  %489 = vmatmul.mubr.f32.gmra.mrb[0].mxu0 %v351
  %v490 = vpop.f32.mrb[0].mxu0
  %v491 = vadd.f32 %v347, %v490
  %v492 = vpop.f32.mrb[0].mxu0
  %v493 = vadd.f32 %v347, %v492
  %494 = vdwg.mxu0
  %v495 = vpack.c.bf16 %v420, %v420
  %v496 = vpack.c.bf16 %v422, %v422
  %v497 = vpack.c.bf16 %v491, %v491
  %v498 = vpack.c.bf16 %v493, %v493
  %v503 = vcombine.low %v495, %v496
  %v504 = vcombine.low %v497, %v498
  %v506 = vunpack.c.l.s4 1983009808
  %v507 = vunpack.c.0.s8 %v506
  %v508 = vlaneseq
  %v509 = vshrl.u32 %v508, 7
  %v510 = vsub.s32 %v507, %v509
  %v511 = vrot.slane %v503, %v510
  %v513 = vunpack.c.l.s4 1983009808
  %v514 = vunpack.c.0.s8 %v513
  %v515 = vlaneseq
  %v516 = vshrl.u32 %v515, 7
  %v517 = vsub.s32 %v514, %v516
  %v518 = vrot.slane %v504, %v517
  %v519 = vcombine.low %v511, %v518
  %521 = vst [vmem:[%s5] sm:$0xff] %v519
  %v522 = vunpack.c.l.bf16 %v495
  %v523 = vunpack.c.l.bf16 %v496
  %v524 = vunpack.c.l.bf16 %v497
  %v525 = vunpack.c.l.bf16 %v498
  %v526 = vld [vmem:[%s1] sm:$0xff]
  %v527 = vld [vmem:[%s1 + $0x8] sm:$0xff]
  %vm528 = vcmask 1043456
  %v529 = vsel %vm528, %v522, 0.0
  %v530 = vsel %vm528, %v523, 0.0
  %v531 = vadd.f32 %v529, %v530
  %v532 = vsel %vm528, %v524, 0.0
  %v533 = vadd.f32 %v531, %v532
  %v534 = vsel %vm528, %v525, 0.0
  %v535 = vadd.f32 %v533, %v534
  %536 = vadd.xlane.f32.xlu0 %v535
  %v537 = vpop.xlane.xlu0 %536
  %v540 = vcombine.high %v526, %v526
  %v541 = vcombine.high %v527, %v527
  %v544 = vsel %vm528, %v526, 0.0
  %v545 = vsel %vm528, %v540, 0.0
  %v546 = vadd.f32 %v544, %v545
  %v547 = vsel %vm528, %v527, 0.0
  %v548 = vadd.f32 %v546, %v547
  %v549 = vsel %vm528, %v541, 0.0
  %v550 = vadd.f32 %v548, %v549
  %551 = vadd.xlane.f32.xlu0 %v550
  %v552 = vpop.xlane.xlu0 %551
  %v554 = vrot.slane %v552, 4
  %v556 = vsel %vm528, %v537, %v554
  %v557 = vmul.f32 %v522, %v522
  %v558 = vmul.f32 %v523, %v523
  %v559 = vmul.f32 %v524, %v524
  %v560 = vmul.f32 %v525, %v525
  %v561 = vsel %vm528, %v557, 0.0
  %v562 = vsel %vm528, %v558, 0.0
  %v563 = vadd.f32 %v561, %v562
  %v564 = vsel %vm528, %v559, 0.0
  %v565 = vadd.f32 %v563, %v564
  %v566 = vsel %vm528, %v560, 0.0
  %v567 = vadd.f32 %v565, %v566
  %568 = vadd.xlane.f32.xlu0 %v567
  %v569 = vpop.xlane.xlu0 %568
  %v570 = vmul.f32 %v526, %v526
  %v571 = vmul.f32 %v527, %v527
  %v574 = vcombine.high %v570, %v570
  %v575 = vcombine.high %v571, %v571
  %v578 = vsel %vm528, %v570, 0.0
  %v579 = vsel %vm528, %v574, 0.0
  %v580 = vadd.f32 %v578, %v579
  %v581 = vsel %vm528, %v571, 0.0
  %v582 = vadd.f32 %v580, %v581
  %v583 = vsel %vm528, %v575, 0.0
  %v584 = vadd.f32 %v582, %v583
  %585 = vadd.xlane.f32.xlu0 %v584
  %v586 = vpop.xlane.xlu0 %585
  %v588 = vrot.slane %v586, 4
  %v590 = vsel %vm528, %v569, %v588
  %592 = vrot.lane.b32.xlu0 %v590, 1
  %v593 = vpop.permute.xlu0 %592
  %v595 = vsel %vm161, %v556, %v593
  %vm596 = vcmask 15360
  %597 = vst.msk [vmem:[%s6] sm:$0xff] %vm596, %v595
  // Predicated region
  $region22: #{_forward_impl.3} parent=0 // pred_check
    _
  $region23: #{_forward_impl.3} parent=0 // pred_check_branch
    %599 = sbr.rel (0) target = $region25
  $region24: #{_forward_impl.3} parent=0 // pred_region
    _
  $region25: #{_forward_impl.3} parent=0 // pred_fallthru
    _
  // Predicated region
  $region26: #{_forward_impl.3} parent=0 // pred_check
    _
  $region27: #{_forward_impl.3} parent=0 // pred_check_branch
    %601 = sbr.rel (0) target = $region29
  $region28: #{_forward_impl.3} parent=0 // pred_region
    _
  $region29: #{_forward_impl.3} parent=0 // pred_fallthru
    _
  // Predicated region
  $region30: #{_forward_impl.3} parent=0 // pred_check
    _
  $region31: #{_forward_impl.3} parent=0 // pred_check_branch
    %603 = sbr.rel (0) target = $region33
  $region32: #{_forward_impl.3} parent=0 // pred_region
    _
  $region33: #{_forward_impl.3} parent=0 // pred_fallthru
    _
  // Predicated region
  $region34: #{_forward_impl.3} parent=0 // pred_check
    _
  $region35: #{_forward_impl.3} parent=0 // pred_check_branch
    %605 = sbr.rel (0) target = $region37
  $region36: #{_forward_impl.3} parent=0 // pred_region
    _
  $region37: #{_forward_impl.3} parent=0 // pred_fallthru
    _

// kernel: _forward_impl.5
$region0: #{_forward_impl.5}
  #allocation0 [shape = 'u32[]', space=smem, size = 0x4, offset = 0x4, fixed_abs, tag = 'smem constant byte address 0x4 - core index']
  #allocation1 [shape = 'u32[144,128]{1,0:T(1,128)}', space=vmem, size = 0x12000, scoped, tag = 'internal scratch']
  %s0 = inlined_call_operand.vmem [shape: bf16[8,512], index: 0, kind: input, shape index: {}]
  %s1 = inlined_call_operand.vmem [shape: bf16[4,512], index: 1, kind: input, shape index: {}]
  %s2 = inlined_call_operand.vmem [shape: f32[4,512], index: 2, kind: input, shape index: {}]
  %s3 = inlined_call_operand.vmem [shape: f32[9,512], index: 3, kind: input, shape index: {}]
  %s4 = inlined_call_operand.vmem [shape: f32[8,1], index: 4, kind: input, shape index: {}]
  %s5 = inlined_call_operand.vmem [shape: f32[8,1], index: 5, kind: input, shape index: {}]
  %s6 = inlined_call_operand.vmem [shape: f32[8,1], index: 6, kind: input, shape index: {}]
  %s7 = inlined_call_operand.vmem [shape: f32[8,1], index: 7, kind: input, shape index: {}]
  %s8 = inlined_call_operand.vmem [shape: f32[8,72], index: 8, kind: input, shape index: {}]
  %s9 = inlined_call_operand.vmem [shape: f32[8,1], index: 9, kind: input, shape index: {}]
  %s10 = inlined_call_operand.vmem [shape: f32[8,8], index: 10, kind: input, shape index: {}]
  %s11 = inlined_call_operand.vmem [shape: f32[8,1], index: 11, kind: input, shape index: {}]
  %s12 = inlined_call_operand.vmem [shape: f32[8,512], index: 12, kind: output, shape index: {}]
  %s13 = sld [smem:[#allocation0]]
  $region58: #{_forward_impl.5} parent=0
    _
  %s15 = ssub.s32 1, %s13
  %s16 = scalar_select 0, %s15, %s13
  // Predicated region
  $region2: #{_forward_impl.5} parent=0 // pred_check
    _
  $region3: #{_forward_impl.5} parent=0 // pred_check_branch
    %18 = sbr.rel (0) target = $region5
  $region4: #{_forward_impl.5} parent=0 // pred_region
    _
  $region5: #{_forward_impl.5} parent=0 // pred_fallthru
    _
  // Predicated region
  $region6: #{_forward_impl.5} parent=0 // pred_check
    _
  $region7: #{_forward_impl.5} parent=0 // pred_check_branch
    %20 = sbr.rel (0) target = $region9
  $region8: #{_forward_impl.5} parent=0 // pred_region
    _
  $region9: #{_forward_impl.5} parent=0 // pred_fallthru
    _
  // Predicated region
  $region10: #{_forward_impl.5} parent=0 // pred_check
    _
  $region11: #{_forward_impl.5} parent=0 // pred_check_branch
    %22 = sbr.rel (0) target = $region13
  $region12: #{_forward_impl.5} parent=0 // pred_region
    _
  $region13: #{_forward_impl.5} parent=0 // pred_fallthru
    _
  // Predicated region
  $region14: #{_forward_impl.5} parent=0 // pred_check
    _
  $region15: #{_forward_impl.5} parent=0 // pred_check_branch
    %24 = sbr.rel (0) target = $region17
  $region16: #{_forward_impl.5} parent=0 // pred_region
    _
  $region17: #{_forward_impl.5} parent=0 // pred_fallthru
    _
  // Predicated region
  $region18: #{_forward_impl.5} parent=0 // pred_check
    _
  $region19: #{_forward_impl.5} parent=0 // pred_check_branch
    %26 = sbr.rel (0) target = $region21
  $region20: #{_forward_impl.5} parent=0 // pred_region
    _
  $region21: #{_forward_impl.5} parent=0 // pred_fallthru
    _
  // Predicated region
  $region22: #{_forward_impl.5} parent=0 // pred_check
    _
  $region23: #{_forward_impl.5} parent=0 // pred_check_branch
    %28 = sbr.rel (0) target = $region25
  $region24: #{_forward_impl.5} parent=0 // pred_region
    _
  $region25: #{_forward_impl.5} parent=0 // pred_fallthru
    _
  // Predicated region
  $region26: #{_forward_impl.5} parent=0 // pred_check
    _
  $region27: #{_forward_impl.5} parent=0 // pred_check_branch
    %30 = sbr.rel (0) target = $region29
  $region28: #{_forward_impl.5} parent=0 // pred_region
    _
  $region29: #{_forward_impl.5} parent=0 // pred_fallthru
    _
  // Predicated region
  $region30: #{_forward_impl.5} parent=0 // pred_check
    _
  $region31: #{_forward_impl.5} parent=0 // pred_check_branch
    %32 = sbr.rel (0) target = $region33
  $region32: #{_forward_impl.5} parent=0 // pred_region
    _
  $region33: #{_forward_impl.5} parent=0 // pred_fallthru
    _
  // Predicated region
  $region34: #{_forward_impl.5} parent=0 // pred_check
    _
  $region35: #{_forward_impl.5} parent=0 // pred_check_branch
    %34 = sbr.rel (0) target = $region37
  $region36: #{_forward_impl.5} parent=0 // pred_region
    _
  $region37: #{_forward_impl.5} parent=0 // pred_fallthru
    _
  // Predicated region
  $region38: #{_forward_impl.5} parent=0 // pred_check
    _
  $region39: #{_forward_impl.5} parent=0 // pred_check_branch
    %36 = sbr.rel (0) target = $region41
  $region40: #{_forward_impl.5} parent=0 // pred_region
    _
  $region41: #{_forward_impl.5} parent=0 // pred_fallthru
    _
  // Predicated region
  $region42: #{_forward_impl.5} parent=0 // pred_check
    _
  $region43: #{_forward_impl.5} parent=0 // pred_check_branch
    %38 = sbr.rel (0) target = $region45
  $region44: #{_forward_impl.5} parent=0 // pred_region
    _
  $region45: #{_forward_impl.5} parent=0 // pred_fallthru
    _
  // Predicated region
  $region46: #{_forward_impl.5} parent=0 // pred_check
    _
  $region47: #{_forward_impl.5} parent=0 // pred_check_branch
    %40 = sbr.rel (0) target = $region49
  $region48: #{_forward_impl.5} parent=0 // pred_region
    _
  $region49: #{_forward_impl.5} parent=0 // pred_fallthru
    _
  %v41 = vld [vmem:[%s0] sm:$0xff]
  %v42 = vld [vmem:[%s0 + $0x8] sm:$0xff]
  %v43 = vunpack.c.l.bf16 %v41
  %v44 = vunpack.c.h.bf16 %v41
  %v45 = vunpack.c.l.bf16 %v42
  %v46 = vunpack.c.h.bf16 %v42
  %v47 = vld [vmem:[%s6] sm:$0xff]
  %49 = vset.pattern.permute.xlu0 0
  %50 = vperm.xlu0 %49, %v47
  %v51 = vpop.permute.xlu0 %50
  %v53 = vmul.f32 %v43, %v51
  %v54 = vmul.f32 %v44, %v51
  %v55 = vmul.f32 %v45, %v51
  %v56 = vmul.f32 %v46, %v51
  %v57 = vld [vmem:[%s7] sm:$0xff]
  %59 = vset.pattern.permute.xlu0 0
  %60 = vperm.xlu0 %59, %v57
  %v61 = vpop.permute.xlu0 %60
  %v63 = vadd.f32 %v53, %v61
  %v64 = vadd.f32 %v54, %v61
  %v65 = vadd.f32 %v55, %v61
  %v66 = vadd.f32 %v56, %v61
  %vm67 = vcmp.gt.f32.partialorder %v63, 0.0
  %vm68 = vcmp.gt.f32.partialorder %v64, 0.0
  %vm69 = vcmp.gt.f32.partialorder %v65, 0.0
  %vm70 = vcmp.gt.f32.partialorder %v66, 0.0
  %v71 = vmul.f32 %v63, 0.2
  %v72 = vmul.f32 %v64, 0.2
  %v73 = vmul.f32 %v65, 0.2
  %v74 = vmul.f32 %v66, 0.2
  %v75 = vsel %vm67, %v63, %v71
  %v76 = vsel %vm68, %v64, %v72
  %v77 = vsel %vm69, %v65, %v73
  %v78 = vsel %vm70, %v66, %v74
  %v79 = vld [vmem:[%s3] sm:$0xff]
  %v80 = vld [vmem:[%s3 + $0x8] sm:$0xff]
  %v81 = vld [vmem:[%s3 + $0x10] sm:$0xff]
  %v82 = vld [vmem:[%s3 + $0x18] sm:$0xff]
  %v83 = vld [vmem:[%s3 + $0x20] sm:$0x1]
  %v84 = vld [vmem:[%s3 + $0x28] sm:$0x1]
  %v85 = vld [vmem:[%s3 + $0x30] sm:$0x1]
  %v86 = vld [vmem:[%s3 + $0x38] sm:$0x1]
  %88 = vrot.lane.b32.xlu0 %v78, 17
  %v89 = vpop.permute.xlu0 %88
  %94 = vrot.lane.b32.xlu0 %v75, 17
  %v95 = vpop.permute.xlu0 %94
  %96 = vrot.lane.b32.xlu0 %v76, 17
  %v97 = vpop.permute.xlu0 %96
  %98 = vrot.lane.b32.xlu0 %v77, 17
  %v99 = vpop.permute.xlu0 %98
  %vm100 = vcmask 138240
  %v101 = vsel %vm100, %v95, %v97
  %v102 = vsel %vm100, %v97, %v99
  %v103 = vsel %vm100, %v99, %v89
  %v108 = vsel %vm100, %v89, %v95
  %v109 = vlaneseq
  %v110 = vshrl.u32 %v109, 7
  %v111 = vsub.s32 0, %v110
  %v112 = vrot.slane %v79, %v111
  %v113 = vlaneseq
  %v114 = vshrl.u32 %v113, 7
  %v115 = vsub.s32 0, %v114
  %v116 = vrot.slane %v80, %v115
  %v117 = vlaneseq
  %v118 = vshrl.u32 %v117, 7
  %v119 = vsub.s32 0, %v118
  %v120 = vrot.slane %v81, %v119
  %v121 = vlaneseq
  %v122 = vshrl.u32 %v121, 7
  %v123 = vsub.s32 0, %v122
  %v124 = vrot.slane %v82, %v123
  %v125 = vmul.f32 %v108, %v112
  %v126 = vmul.f32 %v101, %v116
  %v127 = vmul.f32 %v102, %v120
  %v128 = vmul.f32 %v103, %v124
  %129 = vrot.lane.b32.xlu0 %v78, 16
  %v130 = vpop.permute.xlu0 %129
  %132 = vrot.lane.b32.xlu0 %v75, 16
  %v133 = vpop.permute.xlu0 %132
  %134 = vrot.lane.b32.xlu0 %v76, 16
  %v135 = vpop.permute.xlu0 %134
  %136 = vrot.lane.b32.xlu0 %v77, 16
  %v137 = vpop.permute.xlu0 %136
  %vm138 = vcmask 130048
  %v139 = vsel %vm138, %v133, %v135
  %v140 = vsel %vm138, %v135, %v137
  %v141 = vsel %vm138, %v137, %v130
  %v146 = vsel %vm138, %v130, %v133
  %v147 = vlaneseq
  %v148 = vshrl.u32 %v147, 7
  %v149 = vsub.s32 1, %v148
  %v150 = vrot.slane %v79, %v149
  %v151 = vlaneseq
  %v152 = vshrl.u32 %v151, 7
  %v153 = vsub.s32 1, %v152
  %v154 = vrot.slane %v80, %v153
  %v155 = vlaneseq
  %v156 = vshrl.u32 %v155, 7
  %v157 = vsub.s32 1, %v156
  %v158 = vrot.slane %v81, %v157
  %v159 = vlaneseq
  %v160 = vshrl.u32 %v159, 7
  %v161 = vsub.s32 1, %v160
  %v162 = vrot.slane %v82, %v161
  %v163 = vmul.f32 %v146, %v150
  %v164 = vmul.f32 %v139, %v154
  %v165 = vmul.f32 %v140, %v158
  %v166 = vmul.f32 %v141, %v162
  %167 = vrot.lane.b32.xlu0 %v78, 15
  %v168 = vpop.permute.xlu0 %167
  %170 = vrot.lane.b32.xlu0 %v75, 15
  %v171 = vpop.permute.xlu0 %170
  %172 = vrot.lane.b32.xlu0 %v76, 15
  %v173 = vpop.permute.xlu0 %172
  %174 = vrot.lane.b32.xlu0 %v77, 15
  %v175 = vpop.permute.xlu0 %174
  %vm176 = vcmask 121856
  %v177 = vsel %vm176, %v171, %v173
  %v178 = vsel %vm176, %v173, %v175
  %v179 = vsel %vm176, %v175, %v168
  %v184 = vsel %vm176, %v168, %v171
  %v185 = vlaneseq
  %v186 = vshrl.u32 %v185, 7
  %v187 = vsub.s32 2, %v186
  %v188 = vrot.slane %v79, %v187
  %v189 = vlaneseq
  %v190 = vshrl.u32 %v189, 7
  %v191 = vsub.s32 2, %v190
  %v192 = vrot.slane %v80, %v191
  %v193 = vlaneseq
  %v194 = vshrl.u32 %v193, 7
  %v195 = vsub.s32 2, %v194
  %v196 = vrot.slane %v81, %v195
  %v197 = vlaneseq
  %v198 = vshrl.u32 %v197, 7
  %v199 = vsub.s32 2, %v198
  %v200 = vrot.slane %v82, %v199
  %v201 = vmul.f32 %v184, %v188
  %v202 = vmul.f32 %v177, %v192
  %v203 = vmul.f32 %v178, %v196
  %v204 = vmul.f32 %v179, %v200
  %205 = vrot.lane.b32.xlu0 %v78, 1
  %v206 = vpop.permute.xlu0 %205
  %208 = vrot.lane.b32.xlu0 %v75, 1
  %v209 = vpop.permute.xlu0 %208
  %210 = vrot.lane.b32.xlu0 %v76, 1
  %v211 = vpop.permute.xlu0 %210
  %212 = vrot.lane.b32.xlu0 %v77, 1
  %v213 = vpop.permute.xlu0 %212
  %vm214 = vcmask 7168
  %v215 = vsel %vm214, %v209, %v211
  %v216 = vsel %vm214, %v211, %v213
  %v217 = vsel %vm214, %v213, %v206
  %v222 = vsel %vm214, %v206, %v209
  %v223 = vlaneseq
  %v224 = vshrl.u32 %v223, 7
  %v225 = vsub.s32 3, %v224
  %v226 = vrot.slane %v79, %v225
  %v227 = vlaneseq
  %v228 = vshrl.u32 %v227, 7
  %v229 = vsub.s32 3, %v228
  %v230 = vrot.slane %v80, %v229
  %v231 = vlaneseq
  %v232 = vshrl.u32 %v231, 7
  %v233 = vsub.s32 3, %v232
  %v234 = vrot.slane %v81, %v233
  %v235 = vlaneseq
  %v236 = vshrl.u32 %v235, 7
  %v237 = vsub.s32 3, %v236
  %v238 = vrot.slane %v82, %v237
  %v239 = vmul.f32 %v222, %v226
  %v240 = vmul.f32 %v215, %v230
  %v241 = vmul.f32 %v216, %v234
  %v242 = vmul.f32 %v217, %v238
  %243 = vrot.lane.b32.xlu0 %v75, 127
  %v244 = vpop.permute.xlu0 %243
  %245 = vrot.lane.b32.xlu0 %v76, 127
  %v246 = vpop.permute.xlu0 %245
  %247 = vrot.lane.b32.xlu0 %v77, 127
  %v248 = vpop.permute.xlu0 %247
  %249 = vrot.lane.b32.xlu0 %v78, 127
  %v250 = vpop.permute.xlu0 %249
  %vm251 = vcmask 1039360
  %v252 = vsel %vm251, %v244, %v246
  %v253 = vsel %vm251, %v246, %v248
  %v254 = vsel %vm251, %v248, %v250
  %v260 = vsel %vm251, %v250, %v244
  %v261 = vlaneseq
  %v262 = vshrl.u32 %v261, 7
  %v263 = vsub.s32 5, %v262
  %v264 = vrot.slane %v79, %v263
  %v265 = vlaneseq
  %v266 = vshrl.u32 %v265, 7
  %v267 = vsub.s32 5, %v266
  %v268 = vrot.slane %v80, %v267
  %v269 = vlaneseq
  %v270 = vshrl.u32 %v269, 7
  %v271 = vsub.s32 5, %v270
  %v272 = vrot.slane %v81, %v271
  %v273 = vlaneseq
  %v274 = vshrl.u32 %v273, 7
  %v275 = vsub.s32 5, %v274
  %v276 = vrot.slane %v82, %v275
  %v277 = vmul.f32 %v252, %v264
  %v278 = vmul.f32 %v253, %v268
  %v279 = vmul.f32 %v254, %v272
  %v280 = vmul.f32 %v260, %v276
  %281 = vrot.lane.b32.xlu0 %v75, 113
  %v282 = vpop.permute.xlu0 %281
  %283 = vrot.lane.b32.xlu0 %v76, 113
  %v284 = vpop.permute.xlu0 %283
  %285 = vrot.lane.b32.xlu0 %v77, 113
  %v286 = vpop.permute.xlu0 %285
  %287 = vrot.lane.b32.xlu0 %v78, 113
  %v288 = vpop.permute.xlu0 %287
  %vm289 = vcmask 924672
  %v290 = vsel %vm289, %v282, %v284
  %v291 = vsel %vm289, %v284, %v286
  %v292 = vsel %vm289, %v286, %v288
  %v298 = vsel %vm289, %v288, %v282
  %v299 = vlaneseq
  %v300 = vshrl.u32 %v299, 7
  %v301 = vsub.s32 6, %v300
  %v302 = vrot.slane %v79, %v301
  %v303 = vlaneseq
  %v304 = vshrl.u32 %v303, 7
  %v305 = vsub.s32 6, %v304
  %v306 = vrot.slane %v80, %v305
  %v307 = vlaneseq
  %v308 = vshrl.u32 %v307, 7
  %v309 = vsub.s32 6, %v308
  %v310 = vrot.slane %v81, %v309
  %v311 = vlaneseq
  %v312 = vshrl.u32 %v311, 7
  %v313 = vsub.s32 6, %v312
  %v314 = vrot.slane %v82, %v313
  %v315 = vmul.f32 %v290, %v302
  %v316 = vmul.f32 %v291, %v306
  %v317 = vmul.f32 %v292, %v310
  %v318 = vmul.f32 %v298, %v314
  %319 = vrot.lane.b32.xlu0 %v75, 112
  %v320 = vpop.permute.xlu0 %319
  %321 = vrot.lane.b32.xlu0 %v76, 112
  %v322 = vpop.permute.xlu0 %321
  %323 = vrot.lane.b32.xlu0 %v77, 112
  %v324 = vpop.permute.xlu0 %323
  %325 = vrot.lane.b32.xlu0 %v78, 112
  %v326 = vpop.permute.xlu0 %325
  %vm327 = vcmask 916480
  %v328 = vsel %vm327, %v320, %v322
  %v329 = vsel %vm327, %v322, %v324
  %v330 = vsel %vm327, %v324, %v326
  %v336 = vsel %vm327, %v326, %v320
  %v337 = vlaneseq
  %v338 = vshrl.u32 %v337, 7
  %v339 = vsub.s32 7, %v338
  %v340 = vrot.slane %v79, %v339
  %v341 = vlaneseq
  %v342 = vshrl.u32 %v341, 7
  %v343 = vsub.s32 7, %v342
  %v344 = vrot.slane %v80, %v343
  %v345 = vlaneseq
  %v346 = vshrl.u32 %v345, 7
  %v347 = vsub.s32 7, %v346
  %v348 = vrot.slane %v81, %v347
  %v349 = vlaneseq
  %v350 = vshrl.u32 %v349, 7
  %v351 = vsub.s32 7, %v350
  %v352 = vrot.slane %v82, %v351
  %v353 = vmul.f32 %v328, %v340
  %v354 = vmul.f32 %v329, %v344
  %v355 = vmul.f32 %v330, %v348
  %v356 = vmul.f32 %v336, %v352
  %357 = vrot.lane.b32.xlu0 %v75, 111
  %v358 = vpop.permute.xlu0 %357
  %359 = vrot.lane.b32.xlu0 %v76, 111
  %v360 = vpop.permute.xlu0 %359
  %361 = vrot.lane.b32.xlu0 %v77, 111
  %v362 = vpop.permute.xlu0 %361
  %363 = vrot.lane.b32.xlu0 %v78, 111
  %v364 = vpop.permute.xlu0 %363
  %vm365 = vcmask 908288
  %v366 = vsel %vm365, %v358, %v360
  %v367 = vsel %vm365, %v360, %v362
  %v368 = vsel %vm365, %v362, %v364
  %v374 = vsel %vm365, %v364, %v358
  %v375 = vlaneseq
  %v376 = vshrl.u32 %v375, 7
  %v377 = vsub.s32 0, %v376
  %v378 = vrot.slane %v83, %v377
  %v379 = vlaneseq
  %v380 = vshrl.u32 %v379, 7
  %v381 = vsub.s32 0, %v380
  %v382 = vrot.slane %v84, %v381
  %v383 = vlaneseq
  %v384 = vshrl.u32 %v383, 7
  %v385 = vsub.s32 0, %v384
  %v386 = vrot.slane %v85, %v385
  %v387 = vlaneseq
  %v388 = vshrl.u32 %v387, 7
  %v389 = vsub.s32 0, %v388
  %v390 = vrot.slane %v86, %v389
  %v391 = vmul.f32 %v366, %v378
  %v392 = vmul.f32 %v367, %v382
  %v393 = vmul.f32 %v368, %v386
  %v394 = vmul.f32 %v374, %v390
  %v395 = vld [vmem:[%s8] sm:$0xff]
  %v396 = vld [vmem:[%s9] sm:$0xff]
  %398 = vset.pattern.permute.xlu0 0
  %399 = vperm.xlu0 %398, %v396
  %v400 = vpop.permute.xlu0 %399
  %vm402 = vcmask 588800
  %v404 = vsel %vm402, %v395, 0
  %406 = vmatprep.subr.mxu0 %v126
  %407 = vmatpush1.msra.mxu0 %v125
  %408 = vmatprep.subr.mxu0 %v164
  %409 = vmatpush1.msra.mxu0 %v163
  %410 = vmatprep.subr.mxu0 %v202
  %411 = vmatpush1.msra.mxu0 %v201
  %412 = vmatprep.subr.mxu0 %v240
  %413 = vmatpush1.msra.mxu0 %v239
  %414 = vmatprep.subr.mxu0 %v76
  %415 = vmatpush1.msra.mxu0 %v75
  %416 = vmatprep.subr.mxu0 %v278
  %417 = vmatpush1.msra.mxu0 %v277
  %418 = vmatprep.subr.mxu0 %v316
  %419 = vmatpush1.msra.mxu0 %v315
  %420 = vmatprep.subr.mxu0 %v354
  %421 = vmatpush1.msra.mxu0 %v353
  %422 = vmatprep.subr.mxu0 %v392
  %423 = vmatpush1.msra.mxu0 %v391
  %424 = vmatprep.subr.mxu0 0.0
  %425 = vmatpush1.msra.mxu0 0.0
  %426 = vmatprep.subr.mxu0 0.0
  %427 = vmatpush1.msra.mxu0 0.0
  %428 = vmatprep.subr.mxu0 0.0
  %429 = vmatpush1.msra.mxu0 0.0
  %430 = vmatprep.subr.mxu0 0.0
  %431 = vmatpush1.msra.mxu0 0.0
  %432 = vmatprep.subr.mxu0 0.0
  %433 = vmatpush1.msra.mxu0 0.0
  %434 = vmatprep.subr.mxu0 0.0
  %435 = vmatpush1.msra.mxu0 0.0
  %436 = vmatprep.subr.mxu0 0.0
  %437 = vmatpush1.msra.mxu0 0.0
  %438 = vmatprep.subr.mxu0 0.0
  %439 = vmatpush1.msra.mxu0 0.0
  %440 = vmatprep.subr.mxu0 0.0
  %441 = vmatpush1.msra.mxu0 0.0
  %442 = vmatprep.subr.mxu0 0.0
  %443 = vmatpush1.msra.mxu0 0.0
  %444 = vmatprep.subr.mxu0 0.0
  %445 = vmatpush1.msra.mxu0 0.0
  %446 = vmatprep.subr.mxu0 0.0
  %447 = vmatpush1.msra.mxu0 0.0
  %448 = vmatprep.subr.mxu0 0.0
  %449 = vmatpush1.msra.mxu0 0.0
  %450 = vmatprep.subr.mxu0 0.0
  %451 = vmatpush1.msra.mxu0 0.0
  %452 = vmatprep.subr.mxu0 0.0
  %453 = vmatpush1.msra.mxu0 0.0
  %454 = vmatprep.subr.mxu0 0.0
  %455 = vmatpush1.msra.mxu0 0.0
  %456 = vmatprep.subr.mxu0 0.0
  %457 = vmatpush1.msra.mxu0 0.0
  %458 = vmatprep.subr.mxu0 0.0
  %459 = vmatpush1.msra.mxu0 0.0
  %460 = vmatprep.subr.mxu0 0.0
  %461 = vmatpush1.msra.mxu0 0.0
  %462 = vmatprep.subr.mxu0 0.0
  %463 = vmatpush1.msra.mxu0 0.0
  %464 = vmatprep.subr.mxu0 0.0
  %465 = vmatpush1.msra.mxu0 0.0
  %466 = vmatprep.subr.mxu0 0.0
  %467 = vmatpush1.msra.mxu0 0.0
  %468 = vmatprep.subr.mxu0 0.0
  %469 = vmatpush1.msra.mxu0 0.0
  %470 = vmatprep.mubr.f32.mxu0 0.0
  %471 = vmatmul.mubr.f32.gmra.mrb[0].mxu0 %v404
  %v472 = vpop.f32.mrb[0].mxu0
  %v473 = vadd.f32 %v400, %v472
  %v474 = vpop.f32.mrb[0].mxu0
  %v475 = vadd.f32 %v400, %v474
  %476 = vdwg.mxu0
  %477 = vmatprep.subr.mxu0 %v128
  %478 = vmatpush1.msra.mxu0 %v127
  %479 = vmatprep.subr.mxu0 %v166
  %480 = vmatpush1.msra.mxu0 %v165
  %481 = vmatprep.subr.mxu0 %v204
  %482 = vmatpush1.msra.mxu0 %v203
  %483 = vmatprep.subr.mxu0 %v242
  %484 = vmatpush1.msra.mxu0 %v241
  %485 = vmatprep.subr.mxu0 %v78
  %486 = vmatpush1.msra.mxu0 %v77
  %487 = vmatprep.subr.mxu0 %v280
  %488 = vmatpush1.msra.mxu0 %v279
  %489 = vmatprep.subr.mxu0 %v318
  %490 = vmatpush1.msra.mxu0 %v317
  %491 = vmatprep.subr.mxu0 %v356
  %492 = vmatpush1.msra.mxu0 %v355
  %493 = vmatprep.subr.mxu0 %v394
  %494 = vmatpush1.msra.mxu0 %v393
  %495 = vmatprep.subr.mxu0 0.0
  %496 = vmatpush1.msra.mxu0 0.0
  %497 = vmatprep.subr.mxu0 0.0
  %498 = vmatpush1.msra.mxu0 0.0
  %499 = vmatprep.subr.mxu0 0.0
  %500 = vmatpush1.msra.mxu0 0.0
  %501 = vmatprep.subr.mxu0 0.0
  %502 = vmatpush1.msra.mxu0 0.0
  %503 = vmatprep.subr.mxu0 0.0
  %504 = vmatpush1.msra.mxu0 0.0
  %505 = vmatprep.subr.mxu0 0.0
  %506 = vmatpush1.msra.mxu0 0.0
  %507 = vmatprep.subr.mxu0 0.0
  %508 = vmatpush1.msra.mxu0 0.0
  %509 = vmatprep.subr.mxu0 0.0
  %510 = vmatpush1.msra.mxu0 0.0
  %511 = vmatprep.subr.mxu0 0.0
  %512 = vmatpush1.msra.mxu0 0.0
  %513 = vmatprep.subr.mxu0 0.0
  %514 = vmatpush1.msra.mxu0 0.0
  %515 = vmatprep.subr.mxu0 0.0
  %516 = vmatpush1.msra.mxu0 0.0
  %517 = vmatprep.subr.mxu0 0.0
  %518 = vmatpush1.msra.mxu0 0.0
  %519 = vmatprep.subr.mxu0 0.0
  %520 = vmatpush1.msra.mxu0 0.0
  %521 = vmatprep.subr.mxu0 0.0
  %522 = vmatpush1.msra.mxu0 0.0
  %523 = vmatprep.subr.mxu0 0.0
  %524 = vmatpush1.msra.mxu0 0.0
  %525 = vmatprep.subr.mxu0 0.0
  %526 = vmatpush1.msra.mxu0 0.0
  %527 = vmatprep.subr.mxu0 0.0
  %528 = vmatpush1.msra.mxu0 0.0
  %529 = vmatprep.subr.mxu0 0.0
  %530 = vmatpush1.msra.mxu0 0.0
  %531 = vmatprep.subr.mxu0 0.0
  %532 = vmatpush1.msra.mxu0 0.0
  %533 = vmatprep.subr.mxu0 0.0
  %534 = vmatpush1.msra.mxu0 0.0
  %535 = vmatprep.subr.mxu0 0.0
  %536 = vmatpush1.msra.mxu0 0.0
  %537 = vmatprep.subr.mxu0 0.0
  %538 = vmatpush1.msra.mxu0 0.0
  %539 = vmatprep.subr.mxu0 0.0
  %540 = vmatpush1.msra.mxu0 0.0
  %541 = vmatprep.mubr.f32.mxu0 0.0
  %542 = vmatmul.mubr.f32.gmra.mrb[0].mxu0 %v404
  %v543 = vpop.f32.mrb[0].mxu0
  %v544 = vadd.f32 %v400, %v543
  %v545 = vpop.f32.mrb[0].mxu0
  %v546 = vadd.f32 %v400, %v545
  %547 = vdwg.mxu0
  %v548 = vld [vmem:[%s1] sm:$0xff]
  %v549 = vunpack.c.l.bf16 %v548
  %v550 = vunpack.c.h.bf16 %v548
  %v551 = vld [vmem:[%s2] sm:$0xff]
  %v552 = vld [vmem:[%s2 + $0x8] sm:$0xff]
  %v555 = vcombine.high %v549, %v549
  %v556 = vcombine.high %v550, %v550
  %v561 = vcombine.low %v551, %v551
  %v562 = vcombine.low %v552, %v552
  %vm565 = vcmask 1043456
  %v566 = vsel %vm565, %v549, %v561
  %v567 = vsel %vm565, %v555, %v551
  %v568 = vsel %vm565, %v550, %v562
  %v569 = vsel %vm565, %v556, %v552
  %v570 = vld [vmem:[%s4] sm:$0xff]
  %572 = vset.pattern.permute.xlu0 0
  %573 = vperm.xlu0 %572, %v570
  %v574 = vpop.permute.xlu0 %573
  %v576 = vmul.f32 %v566, %v574
  %v577 = vmul.f32 %v567, %v574
  %v578 = vmul.f32 %v568, %v574
  %v579 = vmul.f32 %v569, %v574
  %v580 = vld [vmem:[%s5] sm:$0xff]
  %582 = vset.pattern.permute.xlu0 0
  %583 = vperm.xlu0 %582, %v580
  %v584 = vpop.permute.xlu0 %583
  %v586 = vadd.f32 %v576, %v584
  %v587 = vadd.f32 %v577, %v584
  %v588 = vadd.f32 %v578, %v584
  %v589 = vadd.f32 %v579, %v584
  %v590 = vld [vmem:[%s10] sm:$0xff]
  %v591 = vld [vmem:[%s11] sm:$0xff]
  %593 = vset.pattern.permute.xlu0 0
  %594 = vperm.xlu0 %593, %v591
  %v595 = vpop.permute.xlu0 %594
  %vm597 = vcmask 64512
  %v599 = vsel %vm597, %v590, 0
  %601 = vmatprep.subr.mxu0 %v587
  %602 = vmatpush1.msra.mxu0 %v586
  %603 = vmatprep.subr.mxu0 0.0
  %604 = vmatpush1.msra.mxu0 0.0
  %605 = vmatprep.subr.mxu0 0.0
  %606 = vmatpush1.msra.mxu0 0.0
  %607 = vmatprep.subr.mxu0 0.0
  %608 = vmatpush1.msra.mxu0 0.0
  %609 = vmatprep.subr.mxu0 0.0
  %610 = vmatpush1.msra.mxu0 0.0
  %611 = vmatprep.subr.mxu0 0.0
  %612 = vmatpush1.msra.mxu0 0.0
  %613 = vmatprep.subr.mxu0 0.0
  %614 = vmatpush1.msra.mxu0 0.0
  %615 = vmatprep.subr.mxu0 0.0
  %616 = vmatpush1.msra.mxu0 0.0
  %617 = vmatprep.subr.mxu0 0.0
  %618 = vmatpush1.msra.mxu0 0.0
  %619 = vmatprep.subr.mxu0 0.0
  %620 = vmatpush1.msra.mxu0 0.0
  %621 = vmatprep.subr.mxu0 0.0
  %622 = vmatpush1.msra.mxu0 0.0
  %623 = vmatprep.subr.mxu0 0.0
  %624 = vmatpush1.msra.mxu0 0.0
  %625 = vmatprep.subr.mxu0 0.0
  %626 = vmatpush1.msra.mxu0 0.0
  %627 = vmatprep.subr.mxu0 0.0
  %628 = vmatpush1.msra.mxu0 0.0
  %629 = vmatprep.subr.mxu0 0.0
  %630 = vmatpush1.msra.mxu0 0.0
  %631 = vmatprep.subr.mxu0 0.0
  %632 = vmatpush1.msra.mxu0 0.0
  %633 = vmatprep.subr.mxu0 0.0
  %634 = vmatpush1.msra.mxu0 0.0
  %635 = vmatprep.subr.mxu0 0.0
  %636 = vmatpush1.msra.mxu0 0.0
  %637 = vmatprep.subr.mxu0 0.0
  %638 = vmatpush1.msra.mxu0 0.0
  %639 = vmatprep.subr.mxu0 0.0
  %640 = vmatpush1.msra.mxu0 0.0
  %641 = vmatprep.subr.mxu0 0.0
  %642 = vmatpush1.msra.mxu0 0.0
  %643 = vmatprep.subr.mxu0 0.0
  %644 = vmatpush1.msra.mxu0 0.0
  %645 = vmatprep.subr.mxu0 0.0
  %646 = vmatpush1.msra.mxu0 0.0
  %647 = vmatprep.subr.mxu0 0.0
  %648 = vmatpush1.msra.mxu0 0.0
  %649 = vmatprep.subr.mxu0 0.0
  %650 = vmatpush1.msra.mxu0 0.0
  %651 = vmatprep.subr.mxu0 0.0
  %652 = vmatpush1.msra.mxu0 0.0
  %653 = vmatprep.subr.mxu0 0.0
  %654 = vmatpush1.msra.mxu0 0.0
  %655 = vmatprep.subr.mxu0 0.0
  %656 = vmatpush1.msra.mxu0 0.0
  %657 = vmatprep.subr.mxu0 0.0
  %658 = vmatpush1.msra.mxu0 0.0
  %659 = vmatprep.subr.mxu0 0.0
  %660 = vmatpush1.msra.mxu0 0.0
  %661 = vmatprep.subr.mxu0 0.0
  %662 = vmatpush1.msra.mxu0 0.0
  %663 = vmatprep.subr.mxu0 0.0
  %664 = vmatpush1.msra.mxu0 0.0
  %665 = vmatprep.mubr.f32.mxu0 0.0
  %666 = vmatmul.mubr.f32.gmra.mrb[0].mxu0 %v599
  %v667 = vpop.f32.mrb[0].mxu0
  %v668 = vadd.f32 %v595, %v667
  %v669 = vpop.f32.mrb[0].mxu0
  %v670 = vadd.f32 %v595, %v669
  %671 = vdwg.mxu0
  %672 = vmatprep.subr.mxu0 %v589
  %673 = vmatpush1.msra.mxu0 %v588
  %674 = vmatprep.subr.mxu0 0.0
  %675 = vmatpush1.msra.mxu0 0.0
  %676 = vmatprep.subr.mxu0 0.0
  %677 = vmatpush1.msra.mxu0 0.0
  %678 = vmatprep.subr.mxu0 0.0
  %679 = vmatpush1.msra.mxu0 0.0
  %680 = vmatprep.subr.mxu0 0.0
  %681 = vmatpush1.msra.mxu0 0.0
  %682 = vmatprep.subr.mxu0 0.0
  %683 = vmatpush1.msra.mxu0 0.0
  %684 = vmatprep.subr.mxu0 0.0
  %685 = vmatpush1.msra.mxu0 0.0
  %686 = vmatprep.subr.mxu0 0.0
  %687 = vmatpush1.msra.mxu0 0.0
  %688 = vmatprep.subr.mxu0 0.0
  %689 = vmatpush1.msra.mxu0 0.0
  %690 = vmatprep.subr.mxu0 0.0
  %691 = vmatpush1.msra.mxu0 0.0
  %692 = vmatprep.subr.mxu0 0.0
  %693 = vmatpush1.msra.mxu0 0.0
  %694 = vmatprep.subr.mxu0 0.0
  %695 = vmatpush1.msra.mxu0 0.0
  %696 = vmatprep.subr.mxu0 0.0
  %697 = vmatpush1.msra.mxu0 0.0
  %698 = vmatprep.subr.mxu0 0.0
  %699 = vmatpush1.msra.mxu0 0.0
  %700 = vmatprep.subr.mxu0 0.0
  %701 = vmatpush1.msra.mxu0 0.0
  %702 = vmatprep.subr.mxu0 0.0
  %703 = vmatpush1.msra.mxu0 0.0
  %704 = vmatprep.subr.mxu0 0.0
  %705 = vmatpush1.msra.mxu0 0.0
  %706 = vmatprep.subr.mxu0 0.0
  %707 = vmatpush1.msra.mxu0 0.0
  %708 = vmatprep.subr.mxu0 0.0
  %709 = vmatpush1.msra.mxu0 0.0
  %710 = vmatprep.subr.mxu0 0.0
  %711 = vmatpush1.msra.mxu0 0.0
  %712 = vmatprep.subr.mxu0 0.0
  %713 = vmatpush1.msra.mxu0 0.0
  %714 = vmatprep.subr.mxu0 0.0
  %715 = vmatpush1.msra.mxu0 0.0
  %716 = vmatprep.subr.mxu0 0.0
  %717 = vmatpush1.msra.mxu0 0.0
  %718 = vmatprep.subr.mxu0 0.0
  %719 = vmatpush1.msra.mxu0 0.0
  %720 = vmatprep.subr.mxu0 0.0
  %721 = vmatpush1.msra.mxu0 0.0
  %722 = vmatprep.subr.mxu0 0.0
  %723 = vmatpush1.msra.mxu0 0.0
  %724 = vmatprep.subr.mxu0 0.0
  %725 = vmatpush1.msra.mxu0 0.0
  %726 = vmatprep.subr.mxu0 0.0
  %727 = vmatpush1.msra.mxu0 0.0
  %728 = vmatprep.subr.mxu0 0.0
  %729 = vmatpush1.msra.mxu0 0.0
  %730 = vmatprep.subr.mxu0 0.0
  %731 = vmatpush1.msra.mxu0 0.0
  %732 = vmatprep.subr.mxu0 0.0
  %733 = vmatpush1.msra.mxu0 0.0
  %734 = vmatprep.subr.mxu0 0.0
  %735 = vmatpush1.msra.mxu0 0.0
  %736 = vmatprep.mubr.f32.mxu0 0.0
  %737 = vmatmul.mubr.f32.gmra.mrb[0].mxu0 %v599
  %v738 = vpop.f32.mrb[0].mxu0
  %v739 = vadd.f32 %v595, %v738
  %v740 = vpop.f32.mrb[0].mxu0
  %v741 = vadd.f32 %v595, %v740
  %742 = vdwg.mxu0
  %v743 = vadd.f32 %v473, %v668
  %v744 = vadd.f32 %v475, %v670
  %v745 = vadd.f32 %v544, %v739
  %v746 = vadd.f32 %v546, %v741
  %747 = vst [vmem:[%s12] sm:$0xff] %v743
  %748 = vst [vmem:[%s12 + $0x8] sm:$0xff] %v744
  %749 = vst [vmem:[%s12 + $0x10] sm:$0xff] %v745
  %750 = vst [vmem:[%s12 + $0x18] sm:$0xff] %v746
  // Predicated region
  $region50: #{_forward_impl.5} parent=0 // pred_check
    _
  $region51: #{_forward_impl.5} parent=0 // pred_check_branch
    %752 = sbr.rel (0) target = $region53
  $region52: #{_forward_impl.5} parent=0 // pred_region
    _
  $region53: #{_forward_impl.5} parent=0 // pred_fallthru
    _
  // Predicated region
  $region54: #{_forward_impl.5} parent=0 // pred_check
    _
  $region55: #{_forward_impl.5} parent=0 // pred_check_branch
    %754 = sbr.rel (0) target = $region57
  $region56: #{_forward_impl.5} parent=0 // pred_region
    _
  $region57: #{_forward_impl.5} parent=0 // pred_fallthru
    _

</llo_original>
